<compile_context>
chip_gen: v7x
topology: tpu7x:2x2x1
jax: 0.10.0
libtpu: 0.0.40
codegen_flags: <defaults>
</compile_context>

<pallas_src>
import numpy as np
import jax
import jax.numpy as jnp
from jax import lax
from jax.experimental import pallas as pl
from jax.experimental.pallas import tpu as pltpu

NEG_SLOPE = 0.2
CONV1_OUT = 8      # Conv1d(1, 8, 3, padding=1)
CONV2_OUT = 16     # Conv1d(8, 16, 3, padding=1)


def symlog(x):
    return jnp.where(x >= 0, 1.0, -1.0) * jnp.log(jnp.abs(x) + 1.0)


# ----------------------------- phase 1: per-node projection -----------------------------
def _node_projection_kernel(soh_ref, xt_ref, w1_ref, b1_ref, w2_ref, b2_ref,
                            w3_ref, b3_ref, wx_ref, woh_ref, xprojT_ref):
    f32 = jnp.float32
    NB = xt_ref.shape[1]                 # nodes in this block (lane axis)
    PADLEN = soh_ref.shape[-1]           # (L + 4) * NB  (2*NB zero blocks on each side)
    L = PADLEN // NB - 4
    LNB = L * NB
    EXT = (L + 2) * NB                   # conv1 evaluated on positions -1 .. L

    # symlog of the sorted one-hot, l-major flat on lanes.
    s = symlog(soh_ref[...])             # [1, (L+4)*NB]
    w1 = w1_ref[...]                     # [8, 3]

    # Conv1d(1, 8, 3, padding=1) + ReLU: three broadcast FMAs, channels on sublanes,
    # (position, node) flat on lanes -> all 128 lanes busy.
    h1 = jnp.maximum(
        w1[:, 0:1] * s[:, 0:EXT]
        + w1[:, 1:2] * s[:, NB:NB + EXT]
        + w1[:, 2:3] * s[:, 2 * NB:2 * NB + EXT]
        + b1_ref[...], 0.0)                                              # [8, (L+2)*NB]
    # zero the two boundary position blocks so they behave as conv2's zero padding
    lane = lax.broadcasted_iota(jnp.int32, (CONV1_OUT, EXT), 1)
    h1 = jnp.where((lane >= NB) & (lane < NB + LNB), h1, 0.0)

    # Conv1d(8, 16, 3, padding=1) + ReLU: one [16,8] x [8,L*NB] MXU matmul per tap,
    # lane-dense output (contraction over the channel sublanes).
    z = (jnp.dot(w2_ref[0], h1[:, 0:LNB], preferred_element_type=f32)
         + jnp.dot(w2_ref[1], h1[:, NB:NB + LNB], preferred_element_type=f32)
         + jnp.dot(w2_ref[2], h1[:, 2 * NB:2 * NB + LNB], preferred_element_type=f32)
         + b2_ref[...])
    z = jnp.maximum(z, 0.0)                                              # [16, L*NB]

    # AdaptiveAvgPool1d(1): mean over the L positions of each node (l-major lane chunks).
    # TODO(synk): for very large L switch to a chunked / fori_loop reduction to bound code size.
    pooled = z[:, 0:NB]
    for l in range(1, L):
        pooled = pooled + z[:, l * NB:(l + 1) * NB]
    pooled = pooled * (1.0 / L)                                          # [16, NB]

    # Linear(16, OHC) and lin(hstack((x, oh_feat))), all transposed (nodes stay on lanes).
    oh_feat = jnp.dot(w3_ref[...], pooled, preferred_element_type=f32) + b3_ref[...]   # [ohc, NB]
    xprojT_ref[...] = (jnp.dot(wx_ref[...], xt_ref[...], preferred_element_type=f32)
                       + jnp.dot(woh_ref[...], oh_feat, preferred_element_type=f32))   # [Cp, NB]


# ------------------- phase 2: attention + aggregation (receiver-row tiled) -------------------
def _attention_kernel(xp_ref, so_all_ref, so_blk_ref, lo_all_ref, hi_all_ref,
                      lo_blk_ref, hi_blk_ref, adj_ref, al_ref, ar_ref, bias_ref,
                      out_x_ref, out_oh_ref):
    f32, bf16 = jnp.float32, jnp.bfloat16

    a = adj_ref[...]                        # [BR, N] bf16, A[r, s] = 1 iff edge s -> r (+self loops)

    # GAT logits from the hoisted per-node attention scalars (rank-1 decomposition):
    # logit[r, s] = att_r . x_r  +  att_l . x_s   (both computed once per graph in the wrapper).
    logits = ar_ref[...] + al_ref[...]      # [BR, 1] + [1, N] -> [BR, N]
    logits = jnp.where(logits >= 0, logits, NEG_SLOPE * logits)          # leaky_relu

    # one_hot_attention == 'dot': scale by 1 / (symlog(oh_r) . symlog(oh_s) + 1),
    # symlog precomputed in bf16 (half the resident VMEM / DMA, no repeated EUP work).
    dots = lax.dot_general(so_blk_ref[...], so_all_ref[...], (((1,), (1,)), ((), ())),
                           preferred_element_type=f32)                   # [BR, N]

    # masked softmax per receiver row (dropout p=0.0 is a no-op); self loops keep rows non-empty.
    mask = a > 0.5
    masked = jnp.where(mask, logits / (dots + 1.0), -1e30)
    m = jnp.max(masked, axis=-1, keepdims=True)
    p = jnp.exp(masked - m)                 # exactly 0 where masked (underflow)
    inv_denom = pl.reciprocal(jnp.sum(p, axis=-1, keepdims=True), approx=True)          # [BR, 1]

    # aggregate: scatter-sum over edges == dense matmul with the attention-weighted adjacency.
    # xp is already bf16 and padded to a lane-dense 128 columns -> unmasked stores, full MXU cols.
    agg = jnp.dot(p.astype(bf16), xp_ref[...], preferred_element_type=f32)              # [BR, Cp]
    out_x_ref[...] = agg * inv_denom + bias_ref[...]

    # one_hot_incay == 'add': A @ onehot + onehot, kept exact while staying on the fast bf16 MXU
    # path via the hi/lo split (hi = counts // 256, lo = remainder; both exact in bf16, f32 acc).
    lo = jnp.dot(a, lo_all_ref[...], preferred_element_type=f32)
    hi = jnp.dot(a, hi_all_ref[...], preferred_element_type=f32)
    out_oh_ref[...] = (lo + 256.0 * hi
                       + lo_blk_ref[...].astype(f32) + 256.0 * hi_blk_ref[...].astype(f32))


# ---------------------------------------- wrapper ----------------------------------------
def _vmem_limit(bytes_estimate):
    # 40 MiB cap keeps headroom on v7x (64 MiB physical per TC); v5e/v6e have 128 MiB.
    return int(min(max(2 * bytes_estimate + (4 << 20), 8 << 20), 40 << 20))


def _pick_row_block(n, l, cp):
    """Receiver rows per phase-2 grid step (second-minor block dim: multiple of 8 or full)."""
    budget = 20 << 20
    best = n
    for cand in (512, 256, 128, 64, 32, 16, 8):
        if cand <= n and n % cand == 0:
            best = cand
            if cand * (26 * n + 10 * l + 4 * cp) <= budget:
                return cand
    return best


def _pick_node_block(n, l):
    """Nodes per phase-1 grid step (lane axis of the conv layout; multiple of 128 or all of N)."""
    if n <= 256 or n % 128 != 0:
        return n
    for cand in (512, 256, 128):
        if n % cand == 0 and (l + 4) * cand * 120 <= (30 << 20):
            return cand
    return 128


def attention_onehot_conv(x, onehot, adj, params):
    """Batched forward of AttentionOneHotConv for G same-sized graphs.

    x:      [G, N, in_c]   node features
    onehot: [G, N, L]      one-hot / count side channel (L == N here, integer counts)
    adj:    [G, N, N]      dense adjacency, adj[g, r, s] = 1 iff edge s -> r, self loops included
    returns (new_x [G, N, out_c], new_onehot [G, N, L])
    """
    G, N, in_c = x.shape
    L = onehot.shape[-1]
    out_c = params["lin_w_x"].shape[1]
    ohc = params["lin_w_oh"].shape[0]
    f32, bf16 = jnp.float32, jnp.bfloat16
    Cp = 128 * ((out_c + 127) // 128)        # lane-dense padded feature width

    NB = _pick_node_block(N, L)
    B = N // NB
    PADLEN = (L + 4) * NB

    # TODO(synk): per-row sort (torch .sort(dim=-1)) has no clean Mosaic lowering; kept in JAX glue.
    soh = jnp.sort(onehot, axis=-1)                                          # [G, N, L]
    # l-major flatten per node block + 2*NB zeros of padding on both ends: every conv tap becomes
    # a plain +/-NB lane offset with the zero boundary padding built in.
    soh_lm = jnp.transpose(soh.reshape(G, B, NB, L), (0, 1, 3, 2)).reshape(G, B, L * NB)
    soh_pad = jnp.pad(soh_lm, ((0, 0), (0, 0), (2 * NB, 2 * NB))).reshape(G, B, 1, PADLEN)
    x_t = jnp.transpose(x, (0, 2, 1))                                        # [G, in_c, N]

    # parameter reshapes / padding for the transposed, lane-dense formulation (tiny, once per call)
    b1 = params["b1"].reshape(CONV1_OUT, 1)
    w2_taps = jnp.transpose(params["w2"], (2, 0, 1))                         # [tap, c_out, c_in]
    b2 = params["b2"].reshape(CONV2_OUT, 1)
    w3 = jnp.transpose(params["w3T"], (1, 0))                                # [ohc, 16]
    b3 = params["b3"].reshape(ohc, 1)
    wx_pad = jnp.pad(jnp.transpose(params["lin_w_x"], (1, 0)), ((0, Cp - out_c), (0, 0)))
    woh_pad = jnp.pad(jnp.transpose(params["lin_w_oh"], (1, 0)), ((0, Cp - out_c), (0, 0)))
    bias_pad = jnp.pad(params["bias"], ((0, 0), (0, Cp - out_c)))            # [1, Cp]

    # ---------------- phase 1: per-node projection (grid over graphs x node blocks) ----------------
    vmem1 = _vmem_limit(4 * (PADLEN * (2 + 3 * CONV1_OUT) + L * NB * 4 * CONV2_OUT
                             + NB * (in_c + 2 * Cp)))
    x_projT = pl.pallas_call(
        _node_projection_kernel,
        out_shape=jax.ShapeDtypeStruct((G, Cp, N), f32),
        grid=(G, B),
        in_specs=[
            pl.BlockSpec((None, None, 1, PADLEN), lambda g, nb: (g, nb, 0, 0)),  # padded sorted onehot
            pl.BlockSpec((None, in_c, NB), lambda g, nb: (g, 0, nb)),            # x^T (nodes on lanes)
            pl.BlockSpec((CONV1_OUT, 3), lambda g, nb: (0, 0)),                  # conv1 weight
            pl.BlockSpec((CONV1_OUT, 1), lambda g, nb: (0, 0)),                  # conv1 bias
            pl.BlockSpec((3, CONV2_OUT, CONV1_OUT), lambda g, nb: (0, 0, 0)),    # conv2 weight per tap
            pl.BlockSpec((CONV2_OUT, 1), lambda g, nb: (0, 0)),                  # conv2 bias
            pl.BlockSpec((ohc, CONV2_OUT), lambda g, nb: (0, 0)),                # Linear(16, OHC) weight
            pl.BlockSpec((ohc, 1), lambda g, nb: (0, 0)),                        # Linear(16, OHC) bias
            pl.BlockSpec((Cp, in_c), lambda g, nb: (0, 0)),                      # lin weight, x part
            pl.BlockSpec((Cp, ohc), lambda g, nb: (0, 0)),                       # lin weight, oh part
        ],
        out_specs=pl.BlockSpec((None, Cp, NB), lambda g, nb: (g, 0, nb)),
        compiler_params=pltpu.CompilerParams(
            dimension_semantics=("parallel", "parallel"), vmem_limit_bytes=vmem1),
    )(soh_pad, x_t, params["w1"], b1, w2_taps, b2, w3, b3, wx_pad, woh_pad)      # [G, Cp, N]

    # ---- per-graph constants for phase 2, hoisted out of the receiver-block loop (review items) ----
    xp_bf16 = jnp.transpose(x_projT, (0, 2, 1)).astype(bf16)                    # [G, N, Cp] bf16
    alpha_l = jnp.einsum('gcn,dc->gdn', x_projT[:, :out_c, :], params["att_l"])  # [G, 1, N] sender term
    alpha_r = jnp.einsum('gcn,dc->gnd', x_projT[:, :out_c, :], params["att_r"])  # [G, N, 1] receiver term
    so_bf16 = symlog(onehot).astype(bf16)                                        # [G, N, L] bf16
    oh_hi_f = jnp.floor(onehot * (1.0 / 256.0))                                  # exact hi/lo split of
    oh_hi = oh_hi_f.astype(bf16)                                                 # the integer counts
    oh_lo = (onehot - 256.0 * oh_hi_f).astype(bf16)
    adj_bf16 = adj.astype(bf16)                                                  # 0/1 is exact in bf16

    # ---------- phase 2: attention + aggregation (grid over graphs x receiver-row blocks) ----------
    br = _pick_row_block(N, L, Cp)
    vmem2 = _vmem_limit(2 * N * (Cp + 3 * L) * 2
                        + 2 * br * (2 * N + 6 * L + 4 * Cp + 4 * L)
                        + 24 * br * N + 8 * N)
    # TODO(synk): for very large N on v7x (64 MiB VMEM) single-buffer the per-graph resident sender
    # blocks (pipeline_mode=pl.Buffered(1)) or add a sender-axis grid dim with online softmax.
    out_x_pad, out_oh = pl.pallas_call(
        _attention_kernel,
        out_shape=(jax.ShapeDtypeStruct((G, N, Cp), f32),
                   jax.ShapeDtypeStruct((G, N, L), f32)),
        grid=(G, N // br),
        in_specs=[
            pl.BlockSpec((None, N, Cp), lambda g, i: (g, 0, 0)),   # x_proj (bf16), all senders
            pl.BlockSpec((None, N, L), lambda g, i: (g, 0, 0)),    # symlog(onehot) bf16, all senders
            pl.BlockSpec((None, br, L), lambda g, i: (g, i, 0)),   # symlog(onehot) bf16, receivers
            pl.BlockSpec((None, N, L), lambda g, i: (g, 0, 0)),    # onehot lo (bf16), all senders
            pl.BlockSpec((None, N, L), lambda g, i: (g, 0, 0)),    # onehot hi (bf16), all senders
            pl.BlockSpec((None, br, L), lambda g, i: (g, i, 0)),   # onehot lo, receiver rows
            pl.BlockSpec((None, br, L), lambda g, i: (g, i, 0)),   # onehot hi, receiver rows
            pl.BlockSpec((None, br, N), lambda g, i: (g, i, 0)),   # adjacency rows (bf16)
            pl.BlockSpec((None, 1, N), lambda g, i: (g, 0, 0)),    # hoisted att_l . x (senders)
            pl.BlockSpec((None, br, 1), lambda g, i: (g, i, 0)),   # hoisted att_r . x (receivers)
            pl.BlockSpec((1, Cp), lambda g, i: (0, 0)),            # bias (padded)
        ],
        out_specs=(pl.BlockSpec((None, br, Cp), lambda g, i: (g, i, 0)),
                   pl.BlockSpec((None, br, L), lambda g, i: (g, i, 0))),
        compiler_params=pltpu.CompilerParams(
            dimension_semantics=("parallel", "parallel"), vmem_limit_bytes=vmem2),
    )(xp_bf16, so_bf16, so_bf16, oh_lo, oh_hi, oh_lo, oh_hi, adj_bf16, alpha_l, alpha_r, bias_pad)

    return out_x_pad[..., :out_c], out_oh


# ------------------------- pure-JAX reference (independent formulation) -------------------------
def _conv1d_ref(x, w, b):
    # x: [N, Cin, L], w: [Cout, Cin, 3], b: [Cout]   (cross-correlation == nn.Conv1d, padding=1)
    L = x.shape[-1]
    xp = jnp.pad(x, ((0, 0), (0, 0), (1, 1)))
    out = b[None, :, None]
    for k in range(3):
        out = out + jnp.einsum('ncl,oc->nol', xp[:, :, k:k + L], w[:, :, k])
    return out


def reference_forward(x, onehot, A, p):
    so_sorted = symlog(jnp.sort(onehot, axis=-1))[:, None, :]                       # [N,1,L]
    h1 = jax.nn.relu(_conv1d_ref(so_sorted, p["w1"][:, None, :], p["b1"]))          # [N,8,L]
    h2 = jax.nn.relu(_conv1d_ref(h1, p["w2"], p["b2"]))                             # [N,16,L]
    pooled = jnp.mean(h2, axis=-1)                                                  # [N,16]
    oh_feat = pooled @ p["w3T"] + p["b3"]                                           # [N,OHC]
    x_proj = x @ p["lin_w_x"] + oh_feat @ p["lin_w_oh"]                             # [N,out_c]
    s_alpha = jnp.sum(x_proj * p["att_l"], axis=-1)
    r_alpha = jnp.sum(x_proj * p["att_r"], axis=-1)
    logits = r_alpha[:, None] + s_alpha[None, :]
    logits = jnp.where(logits >= 0, logits, NEG_SLOPE * logits)
    so = symlog(onehot)
    logits = logits / (so @ so.T + 1.0)
    mask = A > 0.5
    masked = jnp.where(mask, logits, -jnp.inf)
    alpha = jnp.where(mask, jax.nn.softmax(masked, axis=1), 0.0)
    new_x = alpha @ x_proj + p["bias"]
    new_oh = A @ onehot + onehot
    return new_x, new_oh


# ------------------------- deterministic parameter init & test setup -------------------------
def init_params(key, in_channels, out_channels, one_hot_channels):
    ks = jax.random.split(key, 11)

    def g(kk, shape, scale=0.3):
        return scale * jax.random.normal(kk, shape, jnp.float32)

    return dict(
        w1=g(ks[0], (CONV1_OUT, 3)),                          # Conv1d(1,8,3) weight [8,1,3] squeezed
        b1=g(ks[1], (CONV1_OUT,), 0.1),
        w2=g(ks[2], (CONV2_OUT, CONV1_OUT, 3)),               # Conv1d(8,16,3) weight [16,8,3]
        b2=g(ks[3], (CONV2_OUT,), 0.1),
        w3T=g(ks[4], (CONV2_OUT, one_hot_channels)),          # Linear(16, OHC) weight, transposed
        b3=g(ks[5], (1, one_hot_channels), 0.1),
        lin_w_x=g(ks[6], (in_channels, out_channels)),        # lin weight (transposed), x part
        lin_w_oh=g(ks[7], (one_hot_channels, out_channels)),  # lin weight, one-hot part
        att_l=g(ks[8], (1, out_channels)),
        att_r=g(ks[9], (1, out_channels)),
        bias=jnp.zeros((1, out_channels), jnp.float32),       # zeros() init per reset_parameters
    )


def build_dense_adj_np(edges, n):
    # edges: [2, E], row0 = senders, row1 = receivers.  remove_self_loops + add_self_loops.
    A = np.zeros((n, n), np.float32)
    send, recv = edges
    for e in range(send.shape[0]):
        if send[e] != recv[e]:
            A[recv[e], send[e]] = 1.0
    np.fill_diagonal(A, 1.0)
    return A


if __name__ == "__main__":
    key = jax.random.PRNGKey(0)
    in_channels, out_channels, one_hot_channels = 4, 8, 8
    G, N = 2, 16          # two graphs of 16 nodes each, stacked into one batched call

    params = init_params(key, in_channels, out_channels, one_hot_channels)

    xs, onehots, adjs = [], [], []
    k = key
    for gi in range(G):
        k, kx = jax.random.split(k)
        xs.append(jax.random.normal(kx, (N, in_channels), jnp.float32))
        onehots.append(jnp.eye(N, dtype=jnp.float32))         # each node starts seeing itself
        send = np.concatenate([np.arange(N), np.arange(N)])
        recv = np.concatenate([(np.arange(N) + 1) % N, (np.arange(N) + 3 + gi) % N])
        adjs.append(jnp.asarray(build_dense_adj_np(np.stack([send, recv]), N)))

    x_b, oh_b, adj_b = jnp.stack(xs), jnp.stack(onehots), jnp.stack(adjs)

    new_x, new_oh = attention_onehot_conv(x_b, oh_b, adj_b, params)
    jax.block_until_ready((new_x, new_oh))

    for gi in range(G):
        with jax.default_matmul_precision("highest"):
            ref_x, ref_oh = reference_forward(xs[gi], onehots[gi], adjs[gi], params)
        # bf16 MXU operands on the attention matmuls -> slightly looser tolerance for x
        assert np.allclose(np.asarray(new_x[gi]), np.asarray(ref_x), rtol=1e-2, atol=2e-2)
        assert np.allclose(np.asarray(new_oh[gi]), np.asarray(ref_oh), rtol=1e-4, atol=1e-4)

    print("KERNEL_OK")
</pallas_src>

<mosaic_0001>
module attributes {stable_mosaic.version = 11 : i64} {
  func.func @_node_projection_kernel(%arg0: i32, %arg1: i32, %arg2: memref<1x1x1x320xf32, #tpu.memory_space<vmem>>, %arg3: memref<1x4x16xf32, #tpu.memory_space<vmem>>, %arg4: memref<8x3xf32, #tpu.memory_space<vmem>>, %arg5: memref<8x1xf32, #tpu.memory_space<vmem>>, %arg6: memref<3x16x8xf32, #tpu.memory_space<vmem>>, %arg7: memref<16x1xf32, #tpu.memory_space<vmem>>, %arg8: memref<8x16xf32, #tpu.memory_space<vmem>>, %arg9: memref<8x1xf32, #tpu.memory_space<vmem>>, %arg10: memref<128x4xf32, #tpu.memory_space<vmem>>, %arg11: memref<128x8xf32, #tpu.memory_space<vmem>>, %arg12: memref<1x128x16xf32, #tpu.memory_space<vmem>>) attributes {dimension_semantics = [#tpu.dimension_semantics<parallel>, #tpu.dimension_semantics<parallel>], iteration_bounds = array<i64: 2, 1>, scalar_prefetch = 0 : i64, scratch_operands = 0 : i64, tpu.core_type = #tpu.core_type<tc>, window_params = [{transform_indices = @transform_0, window_bounds = array<i64: 1, 1, 1, 320>}, {transform_indices = @transform_1, window_bounds = array<i64: 1, 4, 16>}, {pipeline_mode = #tpu.pipeline_mode<synchronous>, transform_indices = @transform_2, window_bounds = array<i64: 8, 3>}, {pipeline_mode = #tpu.pipeline_mode<synchronous>, transform_indices = @transform_3, window_bounds = array<i64: 8, 1>}, {pipeline_mode = #tpu.pipeline_mode<synchronous>, transform_indices = @transform_4, window_bounds = array<i64: 3, 16, 8>}, {pipeline_mode = #tpu.pipeline_mode<synchronous>, transform_indices = @transform_5, window_bounds = array<i64: 16, 1>}, {pipeline_mode = #tpu.pipeline_mode<synchronous>, transform_indices = @transform_6, window_bounds = array<i64: 8, 16>}, {pipeline_mode = #tpu.pipeline_mode<synchronous>, transform_indices = @transform_7, window_bounds = array<i64: 8, 1>}, {pipeline_mode = #tpu.pipeline_mode<synchronous>, transform_indices = @transform_8, window_bounds = array<i64: 128, 4>}, {pipeline_mode = #tpu.pipeline_mode<synchronous>, transform_indices = @transform_9, window_bounds = array<i64: 128, 8>}, {transform_indices = @transform_10, window_bounds = array<i64: 1, 128, 16>}]} {
    %c0 = arith.constant 0 : index
    %c0_0 = arith.constant 0 : index
    %c0_1 = arith.constant 0 : index
    %c0_2 = arith.constant 0 : index
    %0 = vector.load %arg2[%c0, %c0_0, %c0_1, %c0_2] : memref<1x1x1x320xf32, #tpu.memory_space<vmem>>, vector<1x1x1x320xf32>
    %1 = vector.shape_cast %0 : vector<1x1x1x320xf32> to vector<1x320xf32>
    %cst = arith.constant 0.000000e+00 : f32
    %2 = vector.broadcast %cst : f32 to vector<1x320xf32>
    %3 = arith.cmpf oge, %1, %2 : vector<1x320xf32>
    %cst_3 = arith.constant 1.000000e+00 : f32
    %cst_4 = arith.constant -1.000000e+00 : f32
    %4 = vector.broadcast %cst_3 : f32 to vector<1x320xf32>
    %5 = vector.broadcast %cst_4 : f32 to vector<1x320xf32>
    %6 = arith.select %3, %4, %5 : vector<1x320xi1>, vector<1x320xf32>
    %7 = math.absf %1 : vector<1x320xf32>
    %cst_5 = arith.constant 1.000000e+00 : f32
    %8 = vector.broadcast %cst_5 : f32 to vector<1x320xf32>
    %9 = arith.addf %7, %8 : vector<1x320xf32>
    %10 = math.log %9 : vector<1x320xf32>
    %11 = arith.mulf %6, %10 : vector<1x320xf32>
    %c0_6 = arith.constant 0 : index
    %c0_7 = arith.constant 0 : index
    %12 = vector.load %arg4[%c0_6, %c0_7] : memref<8x3xf32, #tpu.memory_space<vmem>>, vector<8x3xf32>
    %13 = vector.extract_strided_slice %12 {offsets = [0, 0], sizes = [8, 1], strides = [1, 1]} : vector<8x3xf32> to vector<8x1xf32>
    %14 = vector.extract_strided_slice %11 {offsets = [0, 0], sizes = [1, 288], strides = [1, 1]} : vector<1x320xf32> to vector<1x288xf32>
    %15 = vector.broadcast %13 : vector<8x1xf32> to vector<8x288xf32>
    %16 = vector.broadcast %14 : vector<1x288xf32> to vector<8x288xf32>
    %17 = arith.mulf %15, %16 : vector<8x288xf32>
    %18 = vector.extract_strided_slice %12 {offsets = [0, 1], sizes = [8, 1], strides = [1, 1]} : vector<8x3xf32> to vector<8x1xf32>
    %19 = vector.extract_strided_slice %11 {offsets = [0, 16], sizes = [1, 288], strides = [1, 1]} : vector<1x320xf32> to vector<1x288xf32>
    %20 = vector.broadcast %18 : vector<8x1xf32> to vector<8x288xf32>
    %21 = vector.broadcast %19 : vector<1x288xf32> to vector<8x288xf32>
    %22 = arith.mulf %20, %21 : vector<8x288xf32>
    %23 = arith.addf %17, %22 : vector<8x288xf32>
    %24 = vector.extract_strided_slice %12 {offsets = [0, 2], sizes = [8, 1], strides = [1, 1]} : vector<8x3xf32> to vector<8x1xf32>
    %25 = vector.extract_strided_slice %11 {offsets = [0, 32], sizes = [1, 288], strides = [1, 1]} : vector<1x320xf32> to vector<1x288xf32>
    %26 = vector.broadcast %24 : vector<8x1xf32> to vector<8x288xf32>
    %27 = vector.broadcast %25 : vector<1x288xf32> to vector<8x288xf32>
    %28 = arith.mulf %26, %27 : vector<8x288xf32>
    %29 = arith.addf %23, %28 : vector<8x288xf32>
    %c0_8 = arith.constant 0 : index
    %c0_9 = arith.constant 0 : index
    %30 = vector.load %arg5[%c0_8, %c0_9] : memref<8x1xf32, #tpu.memory_space<vmem>>, vector<8x1xf32>
    %31 = vector.broadcast %30 : vector<8x1xf32> to vector<8x288xf32>
    %32 = arith.addf %29, %31 : vector<8x288xf32>
    %cst_10 = arith.constant 0.000000e+00 : f32
    %33 = vector.broadcast %cst_10 : f32 to vector<8x288xf32>
    %34 = arith.maximumf %32, %33 : vector<8x288xf32>
    %35 = tpu.iota {dimensions = array<i32: 1>} : vector<8x288xi32>
    %c16_i32 = arith.constant 16 : i32
    %36 = vector.broadcast %c16_i32 : i32 to vector<8x288xi32>
    %37 = arith.cmpi sge, %35, %36 : vector<8x288xi32>
    %c272_i32 = arith.constant 272 : i32
    %38 = vector.broadcast %c272_i32 : i32 to vector<8x288xi32>
    %39 = arith.cmpi slt, %35, %38 : vector<8x288xi32>
    %40 = arith.andi %37, %39 : vector<8x288xi1>
    %cst_11 = arith.constant 0.000000e+00 : f32
    %41 = vector.broadcast %cst_11 : f32 to vector<8x288xf32>
    %42 = arith.select %40, %34, %41 : vector<8x288xi1>, vector<8x288xf32>
    %c0_12 = arith.constant 0 : index
    %c0_13 = arith.constant 0 : index
    %c0_14 = arith.constant 0 : index
    %43 = vector.load %arg6[%c0_12, %c0_13, %c0_14] : memref<3x16x8xf32, #tpu.memory_space<vmem>>, vector<1x16x8xf32>
    %44 = vector.shape_cast %43 : vector<1x16x8xf32> to vector<16x8xf32>
    %45 = vector.extract_strided_slice %42 {offsets = [0, 0], sizes = [8, 256], strides = [1, 1]} : vector<8x288xf32> to vector<8x256xf32>
    %cst_15 = arith.constant dense<0.000000e+00> : vector<16x256xf32>
    %46 = tpu.matmul %44, %45, %cst_15 {dimension_numbers = #tpu.dot_dimension_numbers<[1], [0], [0], [1], [0, 0, 1, 1], [], []>} : vector<16x8xf32>, vector<8x256xf32>, vector<16x256xf32> -> vector<16x256xf32>
    %c1 = arith.constant 1 : index
    %c0_16 = arith.constant 0 : index
    %c0_17 = arith.constant 0 : index
    %47 = vector.load %arg6[%c1, %c0_16, %c0_17] : memref<3x16x8xf32, #tpu.memory_space<vmem>>, vector<1x16x8xf32>
    %48 = vector.shape_cast %47 : vector<1x16x8xf32> to vector<16x8xf32>
    %49 = vector.extract_strided_slice %42 {offsets = [0, 16], sizes = [8, 256], strides = [1, 1]} : vector<8x288xf32> to vector<8x256xf32>
    %cst_18 = arith.constant dense<0.000000e+00> : vector<16x256xf32>
    %50 = tpu.matmul %48, %49, %cst_18 {dimension_numbers = #tpu.dot_dimension_numbers<[1], [0], [0], [1], [0, 0, 1, 1], [], []>} : vector<16x8xf32>, vector<8x256xf32>, vector<16x256xf32> -> vector<16x256xf32>
    %51 = arith.addf %46, %50 : vector<16x256xf32>
    %c2 = arith.constant 2 : index
    %c0_19 = arith.constant 0 : index
    %c0_20 = arith.constant 0 : index
    %52 = vector.load %arg6[%c2, %c0_19, %c0_20] : memref<3x16x8xf32, #tpu.memory_space<vmem>>, vector<1x16x8xf32>
    %53 = vector.shape_cast %52 : vector<1x16x8xf32> to vector<16x8xf32>
    %54 = vector.extract_strided_slice %42 {offsets = [0, 32], sizes = [8, 256], strides = [1, 1]} : vector<8x288xf32> to vector<8x256xf32>
    %cst_21 = arith.constant dense<0.000000e+00> : vector<16x256xf32>
    %55 = tpu.matmul %53, %54, %cst_21 {dimension_numbers = #tpu.dot_dimension_numbers<[1], [0], [0], [1], [0, 0, 1, 1], [], []>} : vector<16x8xf32>, vector<8x256xf32>, vector<16x256xf32> -> vector<16x256xf32>
    %56 = arith.addf %51, %55 : vector<16x256xf32>
    %c0_22 = arith.constant 0 : index
    %c0_23 = arith.constant 0 : index
    %57 = vector.load %arg7[%c0_22, %c0_23] : memref<16x1xf32, #tpu.memory_space<vmem>>, vector<16x1xf32>
    %58 = vector.broadcast %57 : vector<16x1xf32> to vector<16x256xf32>
    %59 = arith.addf %56, %58 : vector<16x256xf32>
    %cst_24 = arith.constant 0.000000e+00 : f32
    %60 = vector.broadcast %cst_24 : f32 to vector<16x256xf32>
    %61 = arith.maximumf %59, %60 : vector<16x256xf32>
    %62 = vector.extract_strided_slice %61 {offsets = [0, 0], sizes = [16, 16], strides = [1, 1]} : vector<16x256xf32> to vector<16x16xf32>
    %63 = vector.extract_strided_slice %61 {offsets = [0, 16], sizes = [16, 16], strides = [1, 1]} : vector<16x256xf32> to vector<16x16xf32>
    %64 = arith.addf %62, %63 : vector<16x16xf32>
    %65 = vector.extract_strided_slice %61 {offsets = [0, 32], sizes = [16, 16], strides = [1, 1]} : vector<16x256xf32> to vector<16x16xf32>
    %66 = arith.addf %64, %65 : vector<16x16xf32>
    %67 = vector.extract_strided_slice %61 {offsets = [0, 48], sizes = [16, 16], strides = [1, 1]} : vector<16x256xf32> to vector<16x16xf32>
    %68 = arith.addf %66, %67 : vector<16x16xf32>
    %69 = vector.extract_strided_slice %61 {offsets = [0, 64], sizes = [16, 16], strides = [1, 1]} : vector<16x256xf32> to vector<16x16xf32>
    %70 = arith.addf %68, %69 : vector<16x16xf32>
    %71 = vector.extract_strided_slice %61 {offsets = [0, 80], sizes = [16, 16], strides = [1, 1]} : vector<16x256xf32> to vector<16x16xf32>
    %72 = arith.addf %70, %71 : vector<16x16xf32>
    %73 = vector.extract_strided_slice %61 {offsets = [0, 96], sizes = [16, 16], strides = [1, 1]} : vector<16x256xf32> to vector<16x16xf32>
    %74 = arith.addf %72, %73 : vector<16x16xf32>
    %75 = vector.extract_strided_slice %61 {offsets = [0, 112], sizes = [16, 16], strides = [1, 1]} : vector<16x256xf32> to vector<16x16xf32>
    %76 = arith.addf %74, %75 : vector<16x16xf32>
    %77 = vector.extract_strided_slice %61 {offsets = [0, 128], sizes = [16, 16], strides = [1, 1]} : vector<16x256xf32> to vector<16x16xf32>
    %78 = arith.addf %76, %77 : vector<16x16xf32>
    %79 = vector.extract_strided_slice %61 {offsets = [0, 144], sizes = [16, 16], strides = [1, 1]} : vector<16x256xf32> to vector<16x16xf32>
    %80 = arith.addf %78, %79 : vector<16x16xf32>
    %81 = vector.extract_strided_slice %61 {offsets = [0, 160], sizes = [16, 16], strides = [1, 1]} : vector<16x256xf32> to vector<16x16xf32>
    %82 = arith.addf %80, %81 : vector<16x16xf32>
    %83 = vector.extract_strided_slice %61 {offsets = [0, 176], sizes = [16, 16], strides = [1, 1]} : vector<16x256xf32> to vector<16x16xf32>
    %84 = arith.addf %82, %83 : vector<16x16xf32>
    %85 = vector.extract_strided_slice %61 {offsets = [0, 192], sizes = [16, 16], strides = [1, 1]} : vector<16x256xf32> to vector<16x16xf32>
    %86 = arith.addf %84, %85 : vector<16x16xf32>
    %87 = vector.extract_strided_slice %61 {offsets = [0, 208], sizes = [16, 16], strides = [1, 1]} : vector<16x256xf32> to vector<16x16xf32>
    %88 = arith.addf %86, %87 : vector<16x16xf32>
    %89 = vector.extract_strided_slice %61 {offsets = [0, 224], sizes = [16, 16], strides = [1, 1]} : vector<16x256xf32> to vector<16x16xf32>
    %90 = arith.addf %88, %89 : vector<16x16xf32>
    %91 = vector.extract_strided_slice %61 {offsets = [0, 240], sizes = [16, 16], strides = [1, 1]} : vector<16x256xf32> to vector<16x16xf32>
    %92 = arith.addf %90, %91 : vector<16x16xf32>
    %cst_25 = arith.constant 6.250000e-02 : f32
    %93 = vector.broadcast %cst_25 : f32 to vector<16x16xf32>
    %94 = arith.mulf %92, %93 : vector<16x16xf32>
    %c0_26 = arith.constant 0 : index
    %c0_27 = arith.constant 0 : index
    %95 = vector.load %arg8[%c0_26, %c0_27] : memref<8x16xf32, #tpu.memory_space<vmem>>, vector<8x16xf32>
    %cst_28 = arith.constant dense<0.000000e+00> : vector<8x16xf32>
    %96 = tpu.matmul %95, %94, %cst_28 {dimension_numbers = #tpu.dot_dimension_numbers<[1], [0], [0], [1], [0, 0, 1, 1], [], []>} : vector<8x16xf32>, vector<16x16xf32>, vector<8x16xf32> -> vector<8x16xf32>
    %c0_29 = arith.constant 0 : index
    %c0_30 = arith.constant 0 : index
    %97 = vector.load %arg9[%c0_29, %c0_30] : memref<8x1xf32, #tpu.memory_space<vmem>>, vector<8x1xf32>
    %98 = vector.broadcast %97 : vector<8x1xf32> to vector<8x16xf32>
    %99 = arith.addf %96, %98 : vector<8x16xf32>
    %c0_31 = arith.constant 0 : index
    %c0_32 = arith.constant 0 : index
    %100 = vector.load %arg10[%c0_31, %c0_32] : memref<128x4xf32, #tpu.memory_space<vmem>>, vector<128x4xf32>
    %c0_33 = arith.constant 0 : index
    %c0_34 = arith.constant 0 : index
    %c0_35 = arith.constant 0 : index
    %101 = vector.load %arg3[%c0_33, %c0_34, %c0_35] : memref<1x4x16xf32, #tpu.memory_space<vmem>>, vector<1x4x16xf32>
    %102 = vector.shape_cast %101 : vector<1x4x16xf32> to vector<4x16xf32>
    %cst_36 = arith.constant dense<0.000000e+00> : vector<128x16xf32>
    %103 = tpu.matmul %100, %102, %cst_36 {dimension_numbers = #tpu.dot_dimension_numbers<[1], [0], [0], [1], [0, 0, 1, 1], [], []>} : vector<128x4xf32>, vector<4x16xf32>, vector<128x16xf32> -> vector<128x16xf32>
    %c0_37 = arith.constant 0 : index
    %c0_38 = arith.constant 0 : index
    %104 = vector.load %arg11[%c0_37, %c0_38] : memref<128x8xf32, #tpu.memory_space<vmem>>, vector<128x8xf32>
    %cst_39 = arith.constant dense<0.000000e+00> : vector<128x16xf32>
    %105 = tpu.matmul %104, %99, %cst_39 {dimension_numbers = #tpu.dot_dimension_numbers<[1], [0], [0], [1], [0, 0, 1, 1], [], []>} : vector<128x8xf32>, vector<8x16xf32>, vector<128x16xf32> -> vector<128x16xf32>
    %106 = arith.addf %103, %105 : vector<128x16xf32>
    %c0_40 = arith.constant 0 : index
    %c0_41 = arith.constant 0 : index
    %c0_42 = arith.constant 0 : index
    %107 = vector.load %arg12[%c0_40, %c0_41, %c0_42] : memref<1x128x16xf32, #tpu.memory_space<vmem>>, vector<1x128x16xf32>
    %108 = vector.shape_cast %107 : vector<1x128x16xf32> to vector<128x16xf32>
    %109 = vector.shape_cast %106 : vector<128x16xf32> to vector<1x128x16xf32>
    tpu.vector_store %arg12[%c0_40, %c0_41, %c0_42], %109 {strides = array<i32>} : memref<1x128x16xf32, #tpu.memory_space<vmem>>, vector<1x128x16xf32>,
    return
  }
  func.func @transform_0(%arg0: i32, %arg1: i32) -> (i32, i32, i32, i32) {
    %c0_i32 = arith.constant 0 : i32
    %c0_i32_0 = arith.constant 0 : i32
    %c0_i32_1 = arith.constant 0 : i32
    return %arg0, %arg1, %c0_i32, %c0_i32_0 : i32, i32, i32, i32
  }
  func.func @transform_1(%arg0: i32, %arg1: i32) -> (i32, i32, i32) {
    %c0_i32 = arith.constant 0 : i32
    %c0_i32_0 = arith.constant 0 : i32
    return %arg0, %c0_i32, %arg1 : i32, i32, i32
  }
  func.func @transform_2(%arg0: i32, %arg1: i32) -> (i32, i32) {
    %c0_i32 = arith.constant 0 : i32
    %c0_i32_0 = arith.constant 0 : i32
    %c0_i32_1 = arith.constant 0 : i32
    return %c0_i32, %c0_i32_0 : i32, i32
  }
  func.func @transform_3(%arg0: i32, %arg1: i32) -> (i32, i32) {
    %c0_i32 = arith.constant 0 : i32
    %c0_i32_0 = arith.constant 0 : i32
    %c0_i32_1 = arith.constant 0 : i32
    return %c0_i32, %c0_i32_0 : i32, i32
  }
  func.func @transform_4(%arg0: i32, %arg1: i32) -> (i32, i32, i32) {
    %c0_i32 = arith.constant 0 : i32
    %c0_i32_0 = arith.constant 0 : i32
    %c0_i32_1 = arith.constant 0 : i32
    %c0_i32_2 = arith.constant 0 : i32
    return %c0_i32, %c0_i32_0, %c0_i32_1 : i32, i32, i32
  }
  func.func @transform_5(%arg0: i32, %arg1: i32) -> (i32, i32) {
    %c0_i32 = arith.constant 0 : i32
    %c0_i32_0 = arith.constant 0 : i32
    %c0_i32_1 = arith.constant 0 : i32
    return %c0_i32, %c0_i32_0 : i32, i32
  }
  func.func @transform_6(%arg0: i32, %arg1: i32) -> (i32, i32) {
    %c0_i32 = arith.constant 0 : i32
    %c0_i32_0 = arith.constant 0 : i32
    %c0_i32_1 = arith.constant 0 : i32
    return %c0_i32, %c0_i32_0 : i32, i32
  }
  func.func @transform_7(%arg0: i32, %arg1: i32) -> (i32, i32) {
    %c0_i32 = arith.constant 0 : i32
    %c0_i32_0 = arith.constant 0 : i32
    %c0_i32_1 = arith.constant 0 : i32
    return %c0_i32, %c0_i32_0 : i32, i32
  }
  func.func @transform_8(%arg0: i32, %arg1: i32) -> (i32, i32) {
    %c0_i32 = arith.constant 0 : i32
    %c0_i32_0 = arith.constant 0 : i32
    %c0_i32_1 = arith.constant 0 : i32
    return %c0_i32, %c0_i32_0 : i32, i32
  }
  func.func @transform_9(%arg0: i32, %arg1: i32) -> (i32, i32) {
    %c0_i32 = arith.constant 0 : i32
    %c0_i32_0 = arith.constant 0 : i32
    %c0_i32_1 = arith.constant 0 : i32
    return %c0_i32, %c0_i32_0 : i32, i32
  }
  func.func @transform_10(%arg0: i32, %arg1: i32) -> (i32, i32, i32) {
    %c0_i32 = arith.constant 0 : i32
    %c0_i32_0 = arith.constant 0 : i32
    return %arg0, %c0_i32, %arg1 : i32, i32, i32
  }
}

</mosaic_0001>

<llo_original>
// kernel: tpu_custom_call.1
$region0: #{tpu_custom_call.1}
  #allocation0 [shape = 'u32[]', space=smem, size = 0x4, offset = 0x4, fixed_abs, tag = 'smem constant byte address 0x4 - core index']
  #allocation1 [shape = 'u32[144,128]{1,0:T(1,128)}', space=vmem, size = 0x12000, scoped, tag = 'internal scratch']
  %s0 = inlined_call_operand.vmem [shape: f32[2,1,1,320], index: 0, kind: input, shape index: {}]
  %s1 = inlined_call_operand.vmem [shape: f32[2,4,16], index: 1, kind: input, shape index: {}]
  %s2 = inlined_call_operand.vmem [shape: f32[8,3], index: 2, kind: input, shape index: {}]
  %s3 = inlined_call_operand.vmem [shape: f32[8,1], index: 3, kind: input, shape index: {}]
  %s4 = inlined_call_operand.vmem [shape: f32[3,16,8], index: 4, kind: input, shape index: {}]
  %s5 = inlined_call_operand.vmem [shape: f32[16,1], index: 5, kind: input, shape index: {}]
  %s6 = inlined_call_operand.vmem [shape: f32[8,16], index: 6, kind: input, shape index: {}]
  %s7 = inlined_call_operand.vmem [shape: f32[8,1], index: 7, kind: input, shape index: {}]
  %s8 = inlined_call_operand.vmem [shape: f32[128,4], index: 8, kind: input, shape index: {}]
  %s9 = inlined_call_operand.vmem [shape: f32[128,8], index: 9, kind: input, shape index: {}]
  %s10 = inlined_call_operand.vmem [shape: f32[2,128,16], index: 10, kind: output, shape index: {}]
  %s11 = sld [smem:[#allocation0]]
  $region73: #{tpu_custom_call.1} parent=0
    _
  %s13 = ssub.s32 1, %s11
  %s14 = scalar_select 0, %s13, %s11
  loop: start=0, step=1, limit=4
  $region2: #{tpu_custom_call.1} parent=0 // loop_pre_header
    _
  $region3: #{tpu_custom_call.1} parent=0 // loop_header
    %s16 = sphi 0, %s20
    %p17 = scmp.ge.s32.totalorder %s16, 4
    %s23 = sphi 0, %s35
    %s24 = sphi 0, %s31
    %s25 = sphi 0, %s23
    %s26 = sphi 0, %s24
    %s27 = sphi 0, %s25
    %s28 = sphi 0, %s26
    %s40 = sphi 0, %s42
    %s43 = sphi 0, %s40
    %s44 = sphi 0, %s43
    %s60 = sphi 0, %s44
    %s68 = sphi 0, %s70
    %s71 = sphi 0, %s68
    %s72 = sphi 0, %s71
    %s88 = sphi 0, %s72
    %s92 = sphi 0, %s92
    %s94 = sphi 0, %s92
    %s95 = sphi 0, %s94
    %s109 = sphi 0, %s95
    %s113 = sphi 0, %s113
    %s115 = sphi 0, %s113
    %s116 = sphi 0, %s115
    %s130 = sphi 0, %s116
    %s134 = sphi 0, %s134
    %s136 = sphi 0, %s134
    %s137 = sphi 0, %s136
    %s151 = sphi 0, %s137
    %s155 = sphi 0, %s155
    %s157 = sphi 0, %s155
    %s158 = sphi 0, %s157
    %s172 = sphi 0, %s158
    %s176 = sphi 0, %s176
    %s178 = sphi 0, %s176
    %s179 = sphi 0, %s178
    %s193 = sphi 0, %s179
    %s197 = sphi 0, %s197
    %s199 = sphi 0, %s197
    %s200 = sphi 0, %s199
    %s214 = sphi 0, %s200
    %s218 = sphi 0, %s218
    %s220 = sphi 0, %s218
    %s221 = sphi 0, %s220
    %s235 = sphi 0, %s221
    %s239 = sphi 0, %s239
    %s241 = sphi 0, %s239
    %s242 = sphi 0, %s241
    %s256 = sphi 0, %s242
    %s264 = sphi 0, %s266
    %s267 = sphi 0, %s264
    %s268 = sphi 0, %s267
    %s284 = sphi 0, %s268
  $region4: #{tpu_custom_call.1} parent=0 // loop_header_branch
    %19 = sbr.rel (%p17) target = $region8
  $region5: #{tpu_custom_call.1} parent=0 // loop_body
    %s21 = ssub.s32 %s16, 1
    %s22 = ssub.s32 %s16, 2
    %s29 = sadd.s32 1, %s24
    %p30 = scmp.ge.s32.totalorder %s29, 1
    %s31 = scalar_select %p30, 0, %s29
    %s32 = sadd.s32 1, %s23
    %s33 = scalar_select %p30, %s32, %s23
    %p34 = scmp.ge.s32.totalorder %s33, 2
    %s35 = scalar_select %p34, 0, %s33
    %s36 = ssub.s32 %s23, %s35
    %s37 = ssub.s32 %s24, %s31
    %s38 = sor.u32 %s36, %s37
    %p39 = scmp.eq.s32.totalorder %s38, 0
    %s41 = sadd.s32 %s40, 1
    %s42 = scalar_select %p39, %s40, %s41
    %p45 = pneg %p39
    %p46 = scmp.eq.s32.totalorder %s16, 1
    %p47 = por %p45, %p46
    %p48 = scmp.ne.s32.totalorder %s40, %s43
    %p49 = scmp.eq.s32.totalorder %s16, 0
    %p50 = por %p48, %p49
    %p51 = scmp.ne.s32.totalorder %s40, %s43
    %p52 = scmp.eq.s32.totalorder %s21, 1
    %p53 = por %p51, %p52
    %p54 = scmp.ne.s32.totalorder %s43, %s44
    %p55 = scmp.eq.s32.totalorder %s21, 0
    %p56 = por %p54, %p55
    %p57 = scmp.ne.s32.totalorder %s43, %s44
    %p58 = scmp.eq.s32.totalorder %s22, 1
    %p59 = por %p57, %p58
    %p61 = scmp.ne.s32.totalorder %s44, %s60
    %p62 = scmp.eq.s32.totalorder %s22, 0
    %p63 = por %p61, %p62
    %s64 = ssub.s32 %s23, %s35
    %s65 = ssub.s32 %s24, %s31
    %s66 = sor.u32 %s64, %s65
    %p67 = scmp.eq.s32.totalorder %s66, 0
    %s69 = sadd.s32 %s68, 1
    %s70 = scalar_select %p67, %s68, %s69
    %p73 = pneg %p67
    %p74 = scmp.eq.s32.totalorder %s16, 1
    %p75 = por %p73, %p74
    %p76 = scmp.ne.s32.totalorder %s68, %s71
    %p77 = scmp.eq.s32.totalorder %s16, 0
    %p78 = por %p76, %p77
    %p79 = scmp.ne.s32.totalorder %s68, %s71
    %p80 = scmp.eq.s32.totalorder %s21, 1
    %p81 = por %p79, %p80
    %p82 = scmp.ne.s32.totalorder %s71, %s72
    %p83 = scmp.eq.s32.totalorder %s21, 0
    %p84 = por %p82, %p83
    %p85 = scmp.ne.s32.totalorder %s71, %s72
    %p86 = scmp.eq.s32.totalorder %s22, 1
    %p87 = por %p85, %p86
    %p89 = scmp.ne.s32.totalorder %s72, %s88
    %p90 = scmp.eq.s32.totalorder %s22, 0
    %p91 = por %p89, %p90
    %s93 = sadd.s32 %s92, 1
    %p96 = scmp.eq.s32.totalorder %s16, 1
    %p97 = scmp.ne.s32.totalorder %s92, %s94
    %p98 = scmp.eq.s32.totalorder %s16, 0
    %p99 = por %p97, %p98
    %p100 = scmp.ne.s32.totalorder %s92, %s94
    %p101 = scmp.eq.s32.totalorder %s21, 1
    %p102 = por %p100, %p101
    %p103 = scmp.ne.s32.totalorder %s94, %s95
    %p104 = scmp.eq.s32.totalorder %s21, 0
    %p105 = por %p103, %p104
    %p106 = scmp.ne.s32.totalorder %s94, %s95
    %p107 = scmp.eq.s32.totalorder %s22, 1
    %p108 = por %p106, %p107
    %p110 = scmp.ne.s32.totalorder %s95, %s109
    %p111 = scmp.eq.s32.totalorder %s22, 0
    %p112 = por %p110, %p111
    %s114 = sadd.s32 %s113, 1
    %p117 = scmp.eq.s32.totalorder %s16, 1
    %p118 = scmp.ne.s32.totalorder %s113, %s115
    %p119 = scmp.eq.s32.totalorder %s16, 0
    %p120 = por %p118, %p119
    %p121 = scmp.ne.s32.totalorder %s113, %s115
    %p122 = scmp.eq.s32.totalorder %s21, 1
    %p123 = por %p121, %p122
    %p124 = scmp.ne.s32.totalorder %s115, %s116
    %p125 = scmp.eq.s32.totalorder %s21, 0
    %p126 = por %p124, %p125
    %p127 = scmp.ne.s32.totalorder %s115, %s116
    %p128 = scmp.eq.s32.totalorder %s22, 1
    %p129 = por %p127, %p128
    %p131 = scmp.ne.s32.totalorder %s116, %s130
    %p132 = scmp.eq.s32.totalorder %s22, 0
    %p133 = por %p131, %p132
    %s135 = sadd.s32 %s134, 1
    %p138 = scmp.eq.s32.totalorder %s16, 1
    %p139 = scmp.ne.s32.totalorder %s134, %s136
    %p140 = scmp.eq.s32.totalorder %s16, 0
    %p141 = por %p139, %p140
    %p142 = scmp.ne.s32.totalorder %s134, %s136
    %p143 = scmp.eq.s32.totalorder %s21, 1
    %p144 = por %p142, %p143
    %p145 = scmp.ne.s32.totalorder %s136, %s137
    %p146 = scmp.eq.s32.totalorder %s21, 0
    %p147 = por %p145, %p146
    %p148 = scmp.ne.s32.totalorder %s136, %s137
    %p149 = scmp.eq.s32.totalorder %s22, 1
    %p150 = por %p148, %p149
    %p152 = scmp.ne.s32.totalorder %s137, %s151
    %p153 = scmp.eq.s32.totalorder %s22, 0
    %p154 = por %p152, %p153
    %s156 = sadd.s32 %s155, 1
    %p159 = scmp.eq.s32.totalorder %s16, 1
    %p160 = scmp.ne.s32.totalorder %s155, %s157
    %p161 = scmp.eq.s32.totalorder %s16, 0
    %p162 = por %p160, %p161
    %p163 = scmp.ne.s32.totalorder %s155, %s157
    %p164 = scmp.eq.s32.totalorder %s21, 1
    %p165 = por %p163, %p164
    %p166 = scmp.ne.s32.totalorder %s157, %s158
    %p167 = scmp.eq.s32.totalorder %s21, 0
    %p168 = por %p166, %p167
    %p169 = scmp.ne.s32.totalorder %s157, %s158
    %p170 = scmp.eq.s32.totalorder %s22, 1
    %p171 = por %p169, %p170
    %p173 = scmp.ne.s32.totalorder %s158, %s172
    %p174 = scmp.eq.s32.totalorder %s22, 0
    %p175 = por %p173, %p174
    %s177 = sadd.s32 %s176, 1
    %p180 = scmp.eq.s32.totalorder %s16, 1
    %p181 = scmp.ne.s32.totalorder %s176, %s178
    %p182 = scmp.eq.s32.totalorder %s16, 0
    %p183 = por %p181, %p182
    %p184 = scmp.ne.s32.totalorder %s176, %s178
    %p185 = scmp.eq.s32.totalorder %s21, 1
    %p186 = por %p184, %p185
    %p187 = scmp.ne.s32.totalorder %s178, %s179
    %p188 = scmp.eq.s32.totalorder %s21, 0
    %p189 = por %p187, %p188
    %p190 = scmp.ne.s32.totalorder %s178, %s179
    %p191 = scmp.eq.s32.totalorder %s22, 1
    %p192 = por %p190, %p191
    %p194 = scmp.ne.s32.totalorder %s179, %s193
    %p195 = scmp.eq.s32.totalorder %s22, 0
    %p196 = por %p194, %p195
    %s198 = sadd.s32 %s197, 1
    %p201 = scmp.eq.s32.totalorder %s16, 1
    %p202 = scmp.ne.s32.totalorder %s197, %s199
    %p203 = scmp.eq.s32.totalorder %s16, 0
    %p204 = por %p202, %p203
    %p205 = scmp.ne.s32.totalorder %s197, %s199
    %p206 = scmp.eq.s32.totalorder %s21, 1
    %p207 = por %p205, %p206
    %p208 = scmp.ne.s32.totalorder %s199, %s200
    %p209 = scmp.eq.s32.totalorder %s21, 0
    %p210 = por %p208, %p209
    %p211 = scmp.ne.s32.totalorder %s199, %s200
    %p212 = scmp.eq.s32.totalorder %s22, 1
    %p213 = por %p211, %p212
    %p215 = scmp.ne.s32.totalorder %s200, %s214
    %p216 = scmp.eq.s32.totalorder %s22, 0
    %p217 = por %p215, %p216
    %s219 = sadd.s32 %s218, 1
    %p222 = scmp.eq.s32.totalorder %s16, 1
    %p223 = scmp.ne.s32.totalorder %s218, %s220
    %p224 = scmp.eq.s32.totalorder %s16, 0
    %p225 = por %p223, %p224
    %p226 = scmp.ne.s32.totalorder %s218, %s220
    %p227 = scmp.eq.s32.totalorder %s21, 1
    %p228 = por %p226, %p227
    %p229 = scmp.ne.s32.totalorder %s220, %s221
    %p230 = scmp.eq.s32.totalorder %s21, 0
    %p231 = por %p229, %p230
    %p232 = scmp.ne.s32.totalorder %s220, %s221
    %p233 = scmp.eq.s32.totalorder %s22, 1
    %p234 = por %p232, %p233
    %p236 = scmp.ne.s32.totalorder %s221, %s235
    %p237 = scmp.eq.s32.totalorder %s22, 0
    %p238 = por %p236, %p237
    %s240 = sadd.s32 %s239, 1
    %p243 = scmp.eq.s32.totalorder %s16, 1
    %p244 = scmp.ne.s32.totalorder %s239, %s241
    %p245 = scmp.eq.s32.totalorder %s16, 0
    %p246 = por %p244, %p245
    %p247 = scmp.ne.s32.totalorder %s239, %s241
    %p248 = scmp.eq.s32.totalorder %s21, 1
    %p249 = por %p247, %p248
    %p250 = scmp.ne.s32.totalorder %s241, %s242
    %p251 = scmp.eq.s32.totalorder %s21, 0
    %p252 = por %p250, %p251
    %p253 = scmp.ne.s32.totalorder %s241, %s242
    %p254 = scmp.eq.s32.totalorder %s22, 1
    %p255 = por %p253, %p254
    %p257 = scmp.ne.s32.totalorder %s242, %s256
    %p258 = scmp.eq.s32.totalorder %s22, 0
    %p259 = por %p257, %p258
    %s260 = ssub.s32 %s23, %s35
    %s261 = ssub.s32 %s24, %s31
    %s262 = sor.u32 %s260, %s261
    %p263 = scmp.eq.s32.totalorder %s262, 0
    %s265 = sadd.s32 %s264, 1
    %s266 = scalar_select %p263, %s264, %s265
    %p269 = pneg %p263
    %p270 = scmp.eq.s32.totalorder %s16, 1
    %p271 = por %p269, %p270
    %p272 = scmp.ne.s32.totalorder %s264, %s267
    %p273 = scmp.eq.s32.totalorder %s16, 0
    %p274 = por %p272, %p273
    %p275 = scmp.ne.s32.totalorder %s264, %s267
    %p276 = scmp.eq.s32.totalorder %s21, 1
    %p277 = por %p275, %p276
    %p278 = scmp.ne.s32.totalorder %s267, %s268
    %p279 = scmp.eq.s32.totalorder %s21, 0
    %p280 = por %p278, %p279
    %p281 = scmp.ne.s32.totalorder %s267, %s268
    %p282 = scmp.eq.s32.totalorder %s22, 1
    %p283 = por %p281, %p282
    %p285 = scmp.ne.s32.totalorder %s268, %s284
    %p286 = scmp.eq.s32.totalorder %s22, 0
    %p287 = por %p285, %p286
    %p288 = scmp.le.s32.totalorder 1, %s16
    %p289 = scmp.lt.s32.totalorder %s16, 3
    %p290 = pnand %p288, %p289
    %p291 = pneg %p290
    // Predicated region
    $region9: #{tpu_custom_call.1} parent=5 // pred_check
      _
    $region10: #{tpu_custom_call.1} parent=5 // pred_check_branch
      %293 = sbr.rel (%p290) target = $region12
    $region11: #{tpu_custom_call.1} parent=5 // pred_region
      %s294 = ssub.s32 %s16, 1
      // Predicated region
      $region13: #{tpu_custom_call.1} parent=11 // pred_check
        %p295 = pneg %p105
      $region14: #{tpu_custom_call.1} parent=11 // pred_check_branch
        %297 = sbr.rel (%p295) target = $region16
      $region15: #{tpu_custom_call.1} parent=11 // pred_region
        _
      $region16: #{tpu_custom_call.1} parent=11 // pred_fallthru
        _
      // Predicated region
      $region17: #{tpu_custom_call.1} parent=11 // pred_check
        %p298 = pneg %p126
      $region18: #{tpu_custom_call.1} parent=11 // pred_check_branch
        %300 = sbr.rel (%p298) target = $region20
      $region19: #{tpu_custom_call.1} parent=11 // pred_region
        _
      $region20: #{tpu_custom_call.1} parent=11 // pred_fallthru
        _
      // Predicated region
      $region21: #{tpu_custom_call.1} parent=11 // pred_check
        %p301 = pneg %p147
      $region22: #{tpu_custom_call.1} parent=11 // pred_check_branch
        %303 = sbr.rel (%p301) target = $region24
      $region23: #{tpu_custom_call.1} parent=11 // pred_region
        _
      $region24: #{tpu_custom_call.1} parent=11 // pred_fallthru
        _
      // Predicated region
      $region25: #{tpu_custom_call.1} parent=11 // pred_check
        %p304 = pneg %p168
      $region26: #{tpu_custom_call.1} parent=11 // pred_check_branch
        %306 = sbr.rel (%p304) target = $region28
      $region27: #{tpu_custom_call.1} parent=11 // pred_region
        _
      $region28: #{tpu_custom_call.1} parent=11 // pred_fallthru
        _
      // Predicated region
      $region29: #{tpu_custom_call.1} parent=11 // pred_check
        %p307 = pneg %p189
      $region30: #{tpu_custom_call.1} parent=11 // pred_check_branch
        %309 = sbr.rel (%p307) target = $region32
      $region31: #{tpu_custom_call.1} parent=11 // pred_region
        _
      $region32: #{tpu_custom_call.1} parent=11 // pred_fallthru
        _
      // Predicated region
      $region33: #{tpu_custom_call.1} parent=11 // pred_check
        %p310 = pneg %p210
      $region34: #{tpu_custom_call.1} parent=11 // pred_check_branch
        %312 = sbr.rel (%p310) target = $region36
      $region35: #{tpu_custom_call.1} parent=11 // pred_region
        _
      $region36: #{tpu_custom_call.1} parent=11 // pred_fallthru
        _
      // Predicated region
      $region37: #{tpu_custom_call.1} parent=11 // pred_check
        %p313 = pneg %p231
      $region38: #{tpu_custom_call.1} parent=11 // pred_check_branch
        %315 = sbr.rel (%p313) target = $region40
      $region39: #{tpu_custom_call.1} parent=11 // pred_region
        _
      $region40: #{tpu_custom_call.1} parent=11 // pred_fallthru
        _
      // Predicated region
      $region41: #{tpu_custom_call.1} parent=11 // pred_check
        %p316 = pneg %p252
      $region42: #{tpu_custom_call.1} parent=11 // pred_check_branch
        %318 = sbr.rel (%p316) target = $region44
      $region43: #{tpu_custom_call.1} parent=11 // pred_region
        _
      $region44: #{tpu_custom_call.1} parent=11 // pred_fallthru
        _
    $region12: #{tpu_custom_call.1} parent=5 // pred_fallthru
      _
    %p319 = scmp.lt.s32.totalorder %s16, 2
    // Predicated region
    $region45: #{tpu_custom_call.1} parent=5 // pred_check
      %p320 = pneg %p319
    $region46: #{tpu_custom_call.1} parent=5 // pred_check_branch
      %322 = sbr.rel (%p320) target = $region48
    $region47: #{tpu_custom_call.1} parent=5 // pred_region
      // Predicated region
      $region49: #{tpu_custom_call.1} parent=47 // pred_check
        %p323 = pneg %p50
      $region50: #{tpu_custom_call.1} parent=47 // pred_check_branch
        %325 = sbr.rel (%p323) target = $region52
      $region51: #{tpu_custom_call.1} parent=47 // pred_region
        %p326 = scmp.lt.s32.totalorder %s23, 1
        %s327 = scalar_select %p326, %s23, 1
        %p328 = scmp.lt.s32.totalorder %s24, 0
        %s329 = scalar_select %p328, %s24, 0
        %s330 = smul.addr %s329, 3
        %s331 = smul.addr %s327, 3
        %s332 = sadd.s32 %s330, %s331
        %s333 = scalar_lea.vmem %s0, %s332
      $region52: #{tpu_custom_call.1} parent=47 // pred_fallthru
        _
      // Predicated region
      $region53: #{tpu_custom_call.1} parent=47 // pred_check
        %p334 = pneg %p78
      $region54: #{tpu_custom_call.1} parent=47 // pred_check_branch
        %336 = sbr.rel (%p334) target = $region56
      $region55: #{tpu_custom_call.1} parent=47 // pred_region
        %p337 = scmp.lt.s32.totalorder %s23, 1
        %s338 = scalar_select %p337, %s23, 1
        %p339 = scmp.lt.s32.totalorder %s24, 0
        %s340 = scalar_select %p339, %s24, 0
        %s341 = sadd.s32 %s340, %s338
        %s342 = smul.addr %s341, 4
        %s343 = scalar_lea.vmem %s1, %s342
      $region56: #{tpu_custom_call.1} parent=47 // pred_fallthru
        _
    $region48: #{tpu_custom_call.1} parent=5 // pred_fallthru
      _
    %p344 = scmp.le.s32.totalorder 1, %s16
    %p345 = scmp.lt.s32.totalorder %s16, 3
    %p346 = pnand %p344, %p345
    %p347 = pneg %p346
    // Predicated region
    $region57: #{tpu_custom_call.1} parent=5 // pred_check
      _
    $region58: #{tpu_custom_call.1} parent=5 // pred_check_branch
      %349 = sbr.rel (%p346) target = $region60
    $region59: #{tpu_custom_call.1} parent=5 // pred_region
      %s350 = ssub.s32 %s16, 1
      %p351 = scmp.lt.s32.totalorder %s25, 1
      %s352 = scalar_select %p351, %s25, 1
      %p353 = scmp.lt.s32.totalorder %s26, 0
      %s354 = scalar_select %p353, %s26, 0
      %s355 = smul.addr %s354, 3
      %s356 = smul.addr %s352, 3
      %s357 = sadd.s32 %s355, %s356
      %s358 = scalar_lea.vmem %s0, %s357
      %p359 = pneg %p56
      %p360 = pneg %p53
      %p361 = scmp.lt.s32.totalorder %s25, 1
      %s362 = scalar_select %p361, %s25, 1
      %p363 = scmp.lt.s32.totalorder %s26, 0
      %s364 = scalar_select %p363, %s26, 0
      %s365 = sadd.s32 %s364, %s362
      %s366 = smul.addr %s365, 4
      %s367 = scalar_lea.vmem %s1, %s366
      %p368 = pneg %p84
      %p369 = pneg %p81
      %p370 = pneg %p105
      %p371 = pneg %p102
      %p372 = pneg %p126
      %p373 = pneg %p123
      %p374 = pneg %p147
      %p375 = pneg %p144
      %p376 = pneg %p168
      %p377 = pneg %p165
      %p378 = pneg %p189
      %p379 = pneg %p186
      %p380 = pneg %p210
      %p381 = pneg %p207
      %p382 = pneg %p231
      %p383 = pneg %p228
      %p384 = pneg %p252
      %p385 = pneg %p249
      %p386 = pneg %p280
      %p387 = pneg %p277
      %p388 = scmp.lt.s32.totalorder %s25, 1
      %s389 = scalar_select %p388, %s25, 1
      %p390 = scmp.lt.s32.totalorder %s26, 0
      %s391 = scalar_select %p390, %s26, 0
      %s392 = smul.addr %s389, 16
      %s393 = sadd.s32 %s391, %s392
      %s394 = smul.addr %s393, 8
      %s395 = scalar_lea.vmem %s10, %s394
      %p396 = scmp.lt.s32.totalorder %s25, 1
      %s397 = scalar_select %p396, %s25, 1
      %p398 = scmp.lt.s32.totalorder %s26, 0
      %s399 = scalar_select %p398, %s26, 0
      %s400 = smul.addr %s399, 3
      %s401 = smul.addr %s397, 3
      %s402 = sadd.s32 %s400, %s401
      %s403 = scalar_lea.vmem %s0, %s402
      %p404 = scmp.lt.s32.totalorder %s25, 1
      %s405 = scalar_select %p404, %s25, 1
      %p406 = scmp.lt.s32.totalorder %s26, 0
      %s407 = scalar_select %p406, %s26, 0
      %s408 = sadd.s32 %s407, %s405
      %s409 = smul.addr %s408, 4
      %s410 = scalar_lea.vmem %s1, %s409
      %p411 = scmp.lt.s32.totalorder %s25, 1
      %s412 = scalar_select %p411, %s25, 1
      %p413 = scmp.lt.s32.totalorder %s26, 0
      %s414 = scalar_select %p413, %s26, 0
      %s415 = smul.addr %s412, 16
      %s416 = sadd.s32 %s414, %s415
      %s417 = smul.addr %s416, 8
      %s418 = scalar_lea.vmem %s10, %s417
      %v419 = vld [vmem:[%s403] sm:$0x7]
      %vm420 = vcmp.ge.f32.partialorder %v419, 0.0
      %v421 = vsel %vm420, 1.0, -1.0
      %v422 = vand.u32 2147483647, %v419
      %v423 = vadd.f32 %v422, 1.0
      %v424 = vlog2.pop %v423
      %v425 = vmul.f32 %v424, 0.6931472
      %v426 = vmul.f32 %v421, %v425
      %v427 = vld [vmem:[%s2] sm:$0xff]
      %429 = vset.pattern.permute.xlu0 0
      %430 = vperm.xlu0 %429, %v427
      %v431 = vpop.permute.xlu0 %430
      %v434 = vlaneseq
      %v435 = vshrl.u32 %v434, 7
      %v436 = vsub.s32 0, %v435
      %v437 = vrot.slane %v426, %v436
      %v438 = vlaneseq
      %v439 = vshrl.u32 %v438, 7
      %v440 = vsub.s32 1, %v439
      %v441 = vrot.slane %v426, %v440
      %v442 = vlaneseq
      %v443 = vshrl.u32 %v442, 7
      %v444 = vsub.s32 2, %v443
      %v445 = vrot.slane %v426, %v444
      %v449 = vmul.f32 %v431, %v437
      %v450 = vmul.f32 %v431, %v441
      %v451 = vmul.f32 %v431, %v445
      %452 = vset.pattern.permute.xlu0 1
      %453 = vperm.xlu0 %452, %v427
      %v454 = vpop.permute.xlu0 %453
      %v456 = vmul.f32 %v454, %v437
      %v457 = vmul.f32 %v454, %v441
      %v458 = vmul.f32 %v454, %v445
      %462 = vrot.lane.b32.xlu0 %v456, 112
      %v463 = vpop.permute.xlu0 %462
      %464 = vrot.lane.b32.xlu0 %v457, 112
      %v465 = vpop.permute.xlu0 %464
      %466 = vrot.lane.b32.xlu0 %v458, 112
      %v467 = vpop.permute.xlu0 %466
      %vm468 = vcmask 916480
      %v469 = vsel %vm468, %v463, %v465
      %v470 = vsel %vm468, %v465, %v467
      %v474 = vadd.f32 %v449, %v469
      %v475 = vadd.f32 %v450, %v470
      %v476 = vadd.f32 %v451, %v467
      %477 = vset.pattern.permute.xlu0 2
      %478 = vperm.xlu0 %477, %v427
      %v479 = vpop.permute.xlu0 %478
      %v481 = vmul.f32 %v479, %v437
      %v482 = vmul.f32 %v479, %v441
      %v483 = vmul.f32 %v479, %v445
      %487 = vrot.lane.b32.xlu0 %v481, 96
      %v488 = vpop.permute.xlu0 %487
      %489 = vrot.lane.b32.xlu0 %v482, 96
      %v490 = vpop.permute.xlu0 %489
      %491 = vrot.lane.b32.xlu0 %v483, 96
      %v492 = vpop.permute.xlu0 %491
      %vm493 = vcmask 785408
      %v494 = vsel %vm493, %v488, %v490
      %v495 = vsel %vm493, %v490, %v492
      %v499 = vadd.f32 %v474, %v494
      %v500 = vadd.f32 %v475, %v495
      %v501 = vadd.f32 %v476, %v492
      %v502 = vld [vmem:[%s3] sm:$0xff]
      %504 = vset.pattern.permute.xlu0 0
      %505 = vperm.xlu0 %504, %v502
      %v506 = vpop.permute.xlu0 %505
      %v508 = vadd.f32 %v499, %v506
      %v509 = vadd.f32 %v500, %v506
      %v510 = vadd.f32 %v501, %v506
      %v511 = vmax.f32 %v508, 0.0
      %v512 = vmax.f32 %v509, 0.0
      %v513 = vmax.f32 %v510, 0.0
      %v514 = vlaneseq
      %v515 = vand.u32 %v514, 127
      %v516 = vadd.s32 %v515, 128
      %v517 = vadd.s32 %v515, 256
      %vm518 = vcmp.ge.s32.totalorder %v515, 16
      %vm519 = vcmp.ge.s32.totalorder %v516, 16
      %vm520 = vcmp.ge.s32.totalorder %v517, 16
      %vm521 = vcmp.lt.s32.totalorder %v515, 272
      %vm522 = vcmp.lt.s32.totalorder %v516, 272
      %vm523 = vcmp.lt.s32.totalorder %v517, 272
      %vm524 = vmand %vm518, %vm521
      %vm525 = vmand %vm519, %vm522
      %vm526 = vmand %vm520, %vm523
      %v527 = vsel %vm524, %v511, 0.0
      %v528 = vsel %vm525, %v512, 0.0
      %v529 = vsel %vm526, %v513, 0.0
      %v530 = vld [vmem:[%s4] sm:$0xff]
      %v531 = vld [vmem:[%s4 + $0x8] sm:$0xff]
      %s532 = scalar_lea.vmem %s4, 16
      %v533 = vld [vmem:[%s532] sm:$0xff]
      %v534 = vld [vmem:[%s532 + $0x8] sm:$0xff]
      %538 = vrot.lane.b32.xlu0 %v527, 112
      %v539 = vpop.permute.xlu0 %538
      %540 = vrot.lane.b32.xlu0 %v528, 112
      %v541 = vpop.permute.xlu0 %540
      %542 = vrot.lane.b32.xlu0 %v529, 112
      %v543 = vpop.permute.xlu0 %542
      %v544 = vsel %vm468, %v539, %v541
      %v545 = vsel %vm468, %v541, %v543
      %vm548 = vcmask 64512
      %v550 = vsel %vm548, %v533, 0
      %v553 = vsel %vm548, %v534, 0
      %555 = vmatprep.subr.mxu0 %v545
      %556 = vmatpush1.msra.mxu0 %v544
      %557 = vmatprep.subr.mxu0 0.0
      %558 = vmatpush1.msra.mxu0 0.0
      %559 = vmatprep.subr.mxu0 0.0
      %560 = vmatpush1.msra.mxu0 0.0
      %561 = vmatprep.subr.mxu0 0.0
      %562 = vmatpush1.msra.mxu0 0.0
      %563 = vmatprep.subr.mxu0 0.0
      %564 = vmatpush1.msra.mxu0 0.0
      %565 = vmatprep.subr.mxu0 0.0
      %566 = vmatpush1.msra.mxu0 0.0
      %567 = vmatprep.subr.mxu0 0.0
      %568 = vmatpush1.msra.mxu0 0.0
      %569 = vmatprep.subr.mxu0 0.0
      %570 = vmatpush1.msra.mxu0 0.0
      %571 = vmatprep.subr.mxu0 0.0
      %572 = vmatpush1.msra.mxu0 0.0
      %573 = vmatprep.subr.mxu0 0.0
      %574 = vmatpush1.msra.mxu0 0.0
      %575 = vmatprep.subr.mxu0 0.0
      %576 = vmatpush1.msra.mxu0 0.0
      %577 = vmatprep.subr.mxu0 0.0
      %578 = vmatpush1.msra.mxu0 0.0
      %579 = vmatprep.subr.mxu0 0.0
      %580 = vmatpush1.msra.mxu0 0.0
      %581 = vmatprep.subr.mxu0 0.0
      %582 = vmatpush1.msra.mxu0 0.0
      %583 = vmatprep.subr.mxu0 0.0
      %584 = vmatpush1.msra.mxu0 0.0
      %585 = vmatprep.subr.mxu0 0.0
      %586 = vmatpush1.msra.mxu0 0.0
      %587 = vmatprep.subr.mxu0 0.0
      %588 = vmatpush1.msra.mxu0 0.0
      %589 = vmatprep.subr.mxu0 0.0
      %590 = vmatpush1.msra.mxu0 0.0
      %591 = vmatprep.subr.mxu0 0.0
      %592 = vmatpush1.msra.mxu0 0.0
      %593 = vmatprep.subr.mxu0 0.0
      %594 = vmatpush1.msra.mxu0 0.0
      %595 = vmatprep.subr.mxu0 0.0
      %596 = vmatpush1.msra.mxu0 0.0
      %597 = vmatprep.subr.mxu0 0.0
      %598 = vmatpush1.msra.mxu0 0.0
      %599 = vmatprep.subr.mxu0 0.0
      %600 = vmatpush1.msra.mxu0 0.0
      %601 = vmatprep.subr.mxu0 0.0
      %602 = vmatpush1.msra.mxu0 0.0
      %603 = vmatprep.subr.mxu0 0.0
      %604 = vmatpush1.msra.mxu0 0.0
      %605 = vmatprep.subr.mxu0 0.0
      %606 = vmatpush1.msra.mxu0 0.0
      %607 = vmatprep.subr.mxu0 0.0
      %608 = vmatpush1.msra.mxu0 0.0
      %609 = vmatprep.subr.mxu0 0.0
      %610 = vmatpush1.msra.mxu0 0.0
      %611 = vmatprep.subr.mxu0 0.0
      %612 = vmatpush1.msra.mxu0 0.0
      %613 = vmatprep.subr.mxu0 0.0
      %614 = vmatpush1.msra.mxu0 0.0
      %615 = vmatprep.subr.mxu0 0.0
      %616 = vmatpush1.msra.mxu0 0.0
      %617 = vmatprep.subr.mxu0 0.0
      %618 = vmatpush1.msra.mxu0 0.0
      %619 = vmatprep.mubr.f32.mxu0 0.0
      %620 = vmatmul.mubr.f32.gmra.mrb[0].mxu0 %v550
      %v621 = vpop.f32.mrb[0].mxu0
      %v622 = vadd.f32 0.0, %v621
      %v623 = vpop.f32.mrb[0].mxu0
      %v624 = vadd.f32 0.0, %v623
      %625 = vmatprep.mubr.f32.mxu0 0.0
      %626 = vmatmul.mubr.f32.gmra.mrb[0].mxu0 %v553
      %v627 = vpop.f32.mrb[0].mxu0
      %v628 = vadd.f32 0.0, %v627
      %v629 = vpop.f32.mrb[0].mxu0
      %v630 = vadd.f32 0.0, %v629
      %631 = vdwg.mxu0
      %v633 = vsel %vm548, %v530, 0
      %v636 = vsel %vm548, %v531, 0
      %638 = vmatprep.subr.mxu0 %v528
      %639 = vmatpush1.msra.mxu0 %v527
      %640 = vmatprep.subr.mxu0 0.0
      %641 = vmatpush1.msra.mxu0 0.0
      %642 = vmatprep.subr.mxu0 0.0
      %643 = vmatpush1.msra.mxu0 0.0
      %644 = vmatprep.subr.mxu0 0.0
      %645 = vmatpush1.msra.mxu0 0.0
      %646 = vmatprep.subr.mxu0 0.0
      %647 = vmatpush1.msra.mxu0 0.0
      %648 = vmatprep.subr.mxu0 0.0
      %649 = vmatpush1.msra.mxu0 0.0
      %650 = vmatprep.subr.mxu0 0.0
      %651 = vmatpush1.msra.mxu0 0.0
      %652 = vmatprep.subr.mxu0 0.0
      %653 = vmatpush1.msra.mxu0 0.0
      %654 = vmatprep.subr.mxu0 0.0
      %655 = vmatpush1.msra.mxu0 0.0
      %656 = vmatprep.subr.mxu0 0.0
      %657 = vmatpush1.msra.mxu0 0.0
      %658 = vmatprep.subr.mxu0 0.0
      %659 = vmatpush1.msra.mxu0 0.0
      %660 = vmatprep.subr.mxu0 0.0
      %661 = vmatpush1.msra.mxu0 0.0
      %662 = vmatprep.subr.mxu0 0.0
      %663 = vmatpush1.msra.mxu0 0.0
      %664 = vmatprep.subr.mxu0 0.0
      %665 = vmatpush1.msra.mxu0 0.0
      %666 = vmatprep.subr.mxu0 0.0
      %667 = vmatpush1.msra.mxu0 0.0
      %668 = vmatprep.subr.mxu0 0.0
      %669 = vmatpush1.msra.mxu0 0.0
      %670 = vmatprep.subr.mxu0 0.0
      %671 = vmatpush1.msra.mxu0 0.0
      %672 = vmatprep.subr.mxu0 0.0
      %673 = vmatpush1.msra.mxu0 0.0
      %674 = vmatprep.subr.mxu0 0.0
      %675 = vmatpush1.msra.mxu0 0.0
      %676 = vmatprep.subr.mxu0 0.0
      %677 = vmatpush1.msra.mxu0 0.0
      %678 = vmatprep.subr.mxu0 0.0
      %679 = vmatpush1.msra.mxu0 0.0
      %680 = vmatprep.subr.mxu0 0.0
      %681 = vmatpush1.msra.mxu0 0.0
      %682 = vmatprep.subr.mxu0 0.0
      %683 = vmatpush1.msra.mxu0 0.0
      %684 = vmatprep.subr.mxu0 0.0
      %685 = vmatpush1.msra.mxu0 0.0
      %686 = vmatprep.subr.mxu0 0.0
      %687 = vmatpush1.msra.mxu0 0.0
      %688 = vmatprep.subr.mxu0 0.0
      %689 = vmatpush1.msra.mxu0 0.0
      %690 = vmatprep.subr.mxu0 0.0
      %691 = vmatpush1.msra.mxu0 0.0
      %692 = vmatprep.subr.mxu0 0.0
      %693 = vmatpush1.msra.mxu0 0.0
      %694 = vmatprep.subr.mxu0 0.0
      %695 = vmatpush1.msra.mxu0 0.0
      %696 = vmatprep.subr.mxu0 0.0
      %697 = vmatpush1.msra.mxu0 0.0
      %698 = vmatprep.subr.mxu0 0.0
      %699 = vmatpush1.msra.mxu0 0.0
      %700 = vmatprep.subr.mxu0 0.0
      %701 = vmatpush1.msra.mxu0 0.0
      %702 = vmatprep.mubr.f32.mxu0 0.0
      %703 = vmatmul.mubr.f32.gmra.mrb[0].mxu0 %v633
      %v704 = vpop.f32.mrb[0].mxu0
      %v705 = vadd.f32 %v622, %v704
      %v706 = vpop.f32.mrb[0].mxu0
      %v707 = vadd.f32 %v624, %v706
      %708 = vmatprep.mubr.f32.mxu0 0.0
      %709 = vmatmul.mubr.f32.gmra.mrb[0].mxu0 %v636
      %v710 = vpop.f32.mrb[0].mxu0
      %v711 = vadd.f32 %v628, %v710
      %v712 = vpop.f32.mrb[0].mxu0
      %v713 = vadd.f32 %v630, %v712
      %714 = vdwg.mxu0
      %s715 = scalar_lea.vmem %s4, 32
      %v716 = vld [vmem:[%s715] sm:$0xff]
      %v717 = vld [vmem:[%s715 + $0x8] sm:$0xff]
      %718 = vrot.lane.b32.xlu0 %v527, 96
      %v719 = vpop.permute.xlu0 %718
      %720 = vrot.lane.b32.xlu0 %v528, 96
      %v721 = vpop.permute.xlu0 %720
      %722 = vrot.lane.b32.xlu0 %v529, 96
      %v723 = vpop.permute.xlu0 %722
      %v724 = vsel %vm493, %v719, %v721
      %v725 = vsel %vm493, %v721, %v723
      %v729 = vsel %vm548, %v716, 0
      %v732 = vsel %vm548, %v717, 0
      %734 = vmatprep.subr.mxu0 %v725
      %735 = vmatpush1.msra.mxu0 %v724
      %736 = vmatprep.subr.mxu0 0.0
      %737 = vmatpush1.msra.mxu0 0.0
      %738 = vmatprep.subr.mxu0 0.0
      %739 = vmatpush1.msra.mxu0 0.0
      %740 = vmatprep.subr.mxu0 0.0
      %741 = vmatpush1.msra.mxu0 0.0
      %742 = vmatprep.subr.mxu0 0.0
      %743 = vmatpush1.msra.mxu0 0.0
      %744 = vmatprep.subr.mxu0 0.0
      %745 = vmatpush1.msra.mxu0 0.0
      %746 = vmatprep.subr.mxu0 0.0
      %747 = vmatpush1.msra.mxu0 0.0
      %748 = vmatprep.subr.mxu0 0.0
      %749 = vmatpush1.msra.mxu0 0.0
      %750 = vmatprep.subr.mxu0 0.0
      %751 = vmatpush1.msra.mxu0 0.0
      %752 = vmatprep.subr.mxu0 0.0
      %753 = vmatpush1.msra.mxu0 0.0
      %754 = vmatprep.subr.mxu0 0.0
      %755 = vmatpush1.msra.mxu0 0.0
      %756 = vmatprep.subr.mxu0 0.0
      %757 = vmatpush1.msra.mxu0 0.0
      %758 = vmatprep.subr.mxu0 0.0
      %759 = vmatpush1.msra.mxu0 0.0
      %760 = vmatprep.subr.mxu0 0.0
      %761 = vmatpush1.msra.mxu0 0.0
      %762 = vmatprep.subr.mxu0 0.0
      %763 = vmatpush1.msra.mxu0 0.0
      %764 = vmatprep.subr.mxu0 0.0
      %765 = vmatpush1.msra.mxu0 0.0
      %766 = vmatprep.subr.mxu0 0.0
      %767 = vmatpush1.msra.mxu0 0.0
      %768 = vmatprep.subr.mxu0 0.0
      %769 = vmatpush1.msra.mxu0 0.0
      %770 = vmatprep.subr.mxu0 0.0
      %771 = vmatpush1.msra.mxu0 0.0
      %772 = vmatprep.subr.mxu0 0.0
      %773 = vmatpush1.msra.mxu0 0.0
      %774 = vmatprep.subr.mxu0 0.0
      %775 = vmatpush1.msra.mxu0 0.0
      %776 = vmatprep.subr.mxu0 0.0
      %777 = vmatpush1.msra.mxu0 0.0
      %778 = vmatprep.subr.mxu0 0.0
      %779 = vmatpush1.msra.mxu0 0.0
      %780 = vmatprep.subr.mxu0 0.0
      %781 = vmatpush1.msra.mxu0 0.0
      %782 = vmatprep.subr.mxu0 0.0
      %783 = vmatpush1.msra.mxu0 0.0
      %784 = vmatprep.subr.mxu0 0.0
      %785 = vmatpush1.msra.mxu0 0.0
      %786 = vmatprep.subr.mxu0 0.0
      %787 = vmatpush1.msra.mxu0 0.0
      %788 = vmatprep.subr.mxu0 0.0
      %789 = vmatpush1.msra.mxu0 0.0
      %790 = vmatprep.subr.mxu0 0.0
      %791 = vmatpush1.msra.mxu0 0.0
      %792 = vmatprep.subr.mxu0 0.0
      %793 = vmatpush1.msra.mxu0 0.0
      %794 = vmatprep.subr.mxu0 0.0
      %795 = vmatpush1.msra.mxu0 0.0
      %796 = vmatprep.subr.mxu0 0.0
      %797 = vmatpush1.msra.mxu0 0.0
      %798 = vmatprep.mubr.f32.mxu0 0.0
      %799 = vmatmul.mubr.f32.gmra.mrb[0].mxu0 %v729
      %v800 = vpop.f32.mrb[0].mxu0
      %v801 = vadd.f32 0.0, %v800
      %v802 = vpop.f32.mrb[0].mxu0
      %v803 = vadd.f32 0.0, %v802
      %804 = vmatprep.mubr.f32.mxu0 0.0
      %805 = vmatmul.mubr.f32.gmra.mrb[0].mxu0 %v732
      %v806 = vpop.f32.mrb[0].mxu0
      %v807 = vadd.f32 0.0, %v806
      %v808 = vpop.f32.mrb[0].mxu0
      %v809 = vadd.f32 0.0, %v808
      %810 = vdwg.mxu0
      %v811 = vadd.f32 %v705, %v801
      %v812 = vadd.f32 %v707, %v803
      %v813 = vadd.f32 %v711, %v807
      %v814 = vadd.f32 %v713, %v809
      %v815 = vld [vmem:[%s5] sm:$0xff]
      %v816 = vld [vmem:[%s5 + $0x8] sm:$0xff]
      %818 = vset.pattern.permute.xlu0 0
      %819 = vperm.xlu0 %818, %v815
      %v820 = vpop.permute.xlu0 %819
      %823 = vset.pattern.permute.xlu0 0
      %824 = vperm.xlu0 %823, %v816
      %v825 = vpop.permute.xlu0 %824
      %v827 = vadd.f32 %v811, %v820
      %v828 = vadd.f32 %v812, %v820
      %v829 = vadd.f32 %v813, %v825
      %v830 = vadd.f32 %v814, %v825
      %v831 = vmax.f32 %v827, 0.0
      %v832 = vmax.f32 %v828, 0.0
      %v833 = vmax.f32 %v829, 0.0
      %v834 = vmax.f32 %v830, 0.0
      %837 = vrot.lane.b32.xlu0 %v831, 112
      %v838 = vpop.permute.xlu0 %837
      %839 = vrot.lane.b32.xlu0 %v833, 112
      %v840 = vpop.permute.xlu0 %839
      %v843 = vadd.f32 %v831, %v838
      %v844 = vadd.f32 %v833, %v840
      %845 = vrot.lane.b32.xlu0 %v831, 96
      %v846 = vpop.permute.xlu0 %845
      %847 = vrot.lane.b32.xlu0 %v833, 96
      %v848 = vpop.permute.xlu0 %847
      %v851 = vadd.f32 %v843, %v846
      %v852 = vadd.f32 %v844, %v848
      %853 = vrot.lane.b32.xlu0 %v831, 80
      %v854 = vpop.permute.xlu0 %853
      %855 = vrot.lane.b32.xlu0 %v833, 80
      %v856 = vpop.permute.xlu0 %855
      %v859 = vadd.f32 %v851, %v854
      %v860 = vadd.f32 %v852, %v856
      %861 = vrot.lane.b32.xlu0 %v831, 64
      %v862 = vpop.permute.xlu0 %861
      %863 = vrot.lane.b32.xlu0 %v833, 64
      %v864 = vpop.permute.xlu0 %863
      %v867 = vadd.f32 %v859, %v862
      %v868 = vadd.f32 %v860, %v864
      %869 = vrot.lane.b32.xlu0 %v831, 48
      %v870 = vpop.permute.xlu0 %869
      %871 = vrot.lane.b32.xlu0 %v833, 48
      %v872 = vpop.permute.xlu0 %871
      %v875 = vadd.f32 %v867, %v870
      %v876 = vadd.f32 %v868, %v872
      %877 = vrot.lane.b32.xlu0 %v831, 32
      %v878 = vpop.permute.xlu0 %877
      %879 = vrot.lane.b32.xlu0 %v833, 32
      %v880 = vpop.permute.xlu0 %879
      %v883 = vadd.f32 %v875, %v878
      %v884 = vadd.f32 %v876, %v880
      %885 = vrot.lane.b32.xlu0 %v831, 16
      %v886 = vpop.permute.xlu0 %885
      %887 = vrot.lane.b32.xlu0 %v833, 16
      %v888 = vpop.permute.xlu0 %887
      %v891 = vadd.f32 %v883, %v886
      %v892 = vadd.f32 %v884, %v888
      %v893 = vadd.f32 %v891, %v832
      %v894 = vadd.f32 %v892, %v834
      %897 = vrot.lane.b32.xlu0 %v832, 112
      %v898 = vpop.permute.xlu0 %897
      %899 = vrot.lane.b32.xlu0 %v834, 112
      %v900 = vpop.permute.xlu0 %899
      %v903 = vadd.f32 %v893, %v898
      %v904 = vadd.f32 %v894, %v900
      %905 = vrot.lane.b32.xlu0 %v832, 96
      %v906 = vpop.permute.xlu0 %905
      %907 = vrot.lane.b32.xlu0 %v834, 96
      %v908 = vpop.permute.xlu0 %907
      %v911 = vadd.f32 %v903, %v906
      %v912 = vadd.f32 %v904, %v908
      %913 = vrot.lane.b32.xlu0 %v832, 80
      %v914 = vpop.permute.xlu0 %913
      %915 = vrot.lane.b32.xlu0 %v834, 80
      %v916 = vpop.permute.xlu0 %915
      %v919 = vadd.f32 %v911, %v914
      %v920 = vadd.f32 %v912, %v916
      %921 = vrot.lane.b32.xlu0 %v832, 64
      %v922 = vpop.permute.xlu0 %921
      %923 = vrot.lane.b32.xlu0 %v834, 64
      %v924 = vpop.permute.xlu0 %923
      %v927 = vadd.f32 %v919, %v922
      %v928 = vadd.f32 %v920, %v924
      %929 = vrot.lane.b32.xlu0 %v832, 48
      %v930 = vpop.permute.xlu0 %929
      %931 = vrot.lane.b32.xlu0 %v834, 48
      %v932 = vpop.permute.xlu0 %931
      %v935 = vadd.f32 %v927, %v930
      %v936 = vadd.f32 %v928, %v932
      %937 = vrot.lane.b32.xlu0 %v832, 32
      %v938 = vpop.permute.xlu0 %937
      %939 = vrot.lane.b32.xlu0 %v834, 32
      %v940 = vpop.permute.xlu0 %939
      %v943 = vadd.f32 %v935, %v938
      %v944 = vadd.f32 %v936, %v940
      %945 = vrot.lane.b32.xlu0 %v832, 16
      %v946 = vpop.permute.xlu0 %945
      %947 = vrot.lane.b32.xlu0 %v834, 16
      %v948 = vpop.permute.xlu0 %947
      %v951 = vadd.f32 %v943, %v946
      %v952 = vadd.f32 %v944, %v948
      %v953 = vmul.f32 %v951, 0.0625
      %v954 = vmul.f32 %v952, 0.0625
      %v955 = vld [vmem:[%s6] sm:$0xff]
      %v956 = vld [vmem:[%s7] sm:$0xff]
      %958 = vset.pattern.permute.xlu0 0
      %959 = vperm.xlu0 %958, %v956
      %v960 = vpop.permute.xlu0 %959
      %vm962 = vcmask 130048
      %v964 = vsel %vm962, %v955, 0
      %966 = vmatprep.subr.mxu0 0.0
      %967 = vmatpush1.msra.mxu0 %v953
      %968 = vmatprep.subr.mxu0 0.0
      %969 = vmatpush1.msra.mxu0 %v954
      %970 = vmatprep.subr.mxu0 0.0
      %971 = vmatpush1.msra.mxu0 0.0
      %972 = vmatprep.subr.mxu0 0.0
      %973 = vmatpush1.msra.mxu0 0.0
      %974 = vmatprep.subr.mxu0 0.0
      %975 = vmatpush1.msra.mxu0 0.0
      %976 = vmatprep.subr.mxu0 0.0
      %977 = vmatpush1.msra.mxu0 0.0
      %978 = vmatprep.subr.mxu0 0.0
      %979 = vmatpush1.msra.mxu0 0.0
      %980 = vmatprep.subr.mxu0 0.0
      %981 = vmatpush1.msra.mxu0 0.0
      %982 = vmatprep.subr.mxu0 0.0
      %983 = vmatpush1.msra.mxu0 0.0
      %984 = vmatprep.subr.mxu0 0.0
      %985 = vmatpush1.msra.mxu0 0.0
      %986 = vmatprep.subr.mxu0 0.0
      %987 = vmatpush1.msra.mxu0 0.0
      %988 = vmatprep.subr.mxu0 0.0
      %989 = vmatpush1.msra.mxu0 0.0
      %990 = vmatprep.subr.mxu0 0.0
      %991 = vmatpush1.msra.mxu0 0.0
      %992 = vmatprep.subr.mxu0 0.0
      %993 = vmatpush1.msra.mxu0 0.0
      %994 = vmatprep.subr.mxu0 0.0
      %995 = vmatpush1.msra.mxu0 0.0
      %996 = vmatprep.subr.mxu0 0.0
      %997 = vmatpush1.msra.mxu0 0.0
      %998 = vmatprep.subr.mxu0 0.0
      %999 = vmatpush1.msra.mxu0 0.0
      %1000 = vmatprep.subr.mxu0 0.0
      %1001 = vmatpush1.msra.mxu0 0.0
      %1002 = vmatprep.subr.mxu0 0.0
      %1003 = vmatpush1.msra.mxu0 0.0
      %1004 = vmatprep.subr.mxu0 0.0
      %1005 = vmatpush1.msra.mxu0 0.0
      %1006 = vmatprep.subr.mxu0 0.0
      %1007 = vmatpush1.msra.mxu0 0.0
      %1008 = vmatprep.subr.mxu0 0.0
      %1009 = vmatpush1.msra.mxu0 0.0
      %1010 = vmatprep.subr.mxu0 0.0
      %1011 = vmatpush1.msra.mxu0 0.0
      %1012 = vmatprep.subr.mxu0 0.0
      %1013 = vmatpush1.msra.mxu0 0.0
      %1014 = vmatprep.subr.mxu0 0.0
      %1015 = vmatpush1.msra.mxu0 0.0
      %1016 = vmatprep.subr.mxu0 0.0
      %1017 = vmatpush1.msra.mxu0 0.0
      %1018 = vmatprep.subr.mxu0 0.0
      %1019 = vmatpush1.msra.mxu0 0.0
      %1020 = vmatprep.subr.mxu0 0.0
      %1021 = vmatpush1.msra.mxu0 0.0
      %1022 = vmatprep.subr.mxu0 0.0
      %1023 = vmatpush1.msra.mxu0 0.0
      %1024 = vmatprep.subr.mxu0 0.0
      %1025 = vmatpush1.msra.mxu0 0.0
      %1026 = vmatprep.subr.mxu0 0.0
      %1027 = vmatpush1.msra.mxu0 0.0
      %1028 = vmatprep.subr.mxu0 0.0
      %1029 = vmatpush1.msra.mxu0 0.0
      %1030 = vmatprep.mubr.f32.mxu0 0.0
      %1031 = vmatmul.mubr.f32.gmra.mrb[0].mxu0 %v964
      %v1032 = vpop.f32.mrb[0].mxu0
      %v1033 = vadd.f32 %v960, %v1032
      %v1034 = vpop.f32.mrb[0].mxu0
      %1035 = vdwg.mxu0
      %v1036 = vld [vmem:[%s8] sm:$0xff]
      %v1037 = vld [vmem:[%s8 + $0x8] sm:$0xff]
      %v1038 = vld [vmem:[%s8 + $0x10] sm:$0xff]
      %v1039 = vld [vmem:[%s8 + $0x18] sm:$0xff]
      %v1040 = vld [vmem:[%s8 + $0x20] sm:$0xff]
      %v1041 = vld [vmem:[%s8 + $0x28] sm:$0xff]
      %v1042 = vld [vmem:[%s8 + $0x30] sm:$0xff]
      %v1043 = vld [vmem:[%s8 + $0x38] sm:$0xff]
      %v1044 = vld [vmem:[%s8 + $0x40] sm:$0xff]
      %v1045 = vld [vmem:[%s8 + $0x48] sm:$0xff]
      %v1046 = vld [vmem:[%s8 + $0x50] sm:$0xff]
      %v1047 = vld [vmem:[%s8 + $0x58] sm:$0xff]
      %v1048 = vld [vmem:[%s8 + $0x60] sm:$0xff]
      %v1049 = vld [vmem:[%s8 + $0x68] sm:$0xff]
      %v1050 = vld [vmem:[%s8 + $0x70] sm:$0xff]
      %v1051 = vld [vmem:[%s8 + $0x78] sm:$0xff]
      %v1052 = vld [vmem:[%s410] sm:$0xf]
      %v1053 = vld [vmem:[%s9] sm:$0xff]
      %v1054 = vld [vmem:[%s9 + $0x8] sm:$0xff]
      %v1055 = vld [vmem:[%s9 + $0x10] sm:$0xff]
      %v1056 = vld [vmem:[%s9 + $0x18] sm:$0xff]
      %v1057 = vld [vmem:[%s9 + $0x20] sm:$0xff]
      %v1058 = vld [vmem:[%s9 + $0x28] sm:$0xff]
      %v1059 = vld [vmem:[%s9 + $0x30] sm:$0xff]
      %v1060 = vld [vmem:[%s9 + $0x38] sm:$0xff]
      %v1061 = vld [vmem:[%s9 + $0x40] sm:$0xff]
      %v1062 = vld [vmem:[%s9 + $0x48] sm:$0xff]
      %v1063 = vld [vmem:[%s9 + $0x50] sm:$0xff]
      %v1064 = vld [vmem:[%s9 + $0x58] sm:$0xff]
      %v1065 = vld [vmem:[%s9 + $0x60] sm:$0xff]
      %v1066 = vld [vmem:[%s9 + $0x68] sm:$0xff]
      %v1067 = vld [vmem:[%s9 + $0x70] sm:$0xff]
      %v1068 = vld [vmem:[%s9 + $0x78] sm:$0xff]
      %v1070 = vsel %vm548, %v1053, 0
      %v1073 = vsel %vm548, %v1054, 0
      %v1076 = vsel %vm548, %v1055, 0
      %v1079 = vsel %vm548, %v1056, 0
      %v1082 = vsel %vm548, %v1057, 0
      %v1085 = vsel %vm548, %v1058, 0
      %v1088 = vsel %vm548, %v1059, 0
      %v1091 = vsel %vm548, %v1060, 0
      %v1094 = vsel %vm548, %v1061, 0
      %v1097 = vsel %vm548, %v1062, 0
      %v1100 = vsel %vm548, %v1063, 0
      %v1103 = vsel %vm548, %v1064, 0
      %v1106 = vsel %vm548, %v1065, 0
      %v1109 = vsel %vm548, %v1066, 0
      %v1112 = vsel %vm548, %v1067, 0
      %v1115 = vsel %vm548, %v1068, 0
      %1117 = vmatprep.subr.mxu0 0.0
      %1118 = vmatpush1.msra.mxu0 %v1033
      %1119 = vmatprep.subr.mxu0 0.0
      %1120 = vmatpush1.msra.mxu0 0.0
      %1121 = vmatprep.subr.mxu0 0.0
      %1122 = vmatpush1.msra.mxu0 0.0
      %1123 = vmatprep.subr.mxu0 0.0
      %1124 = vmatpush1.msra.mxu0 0.0
      %1125 = vmatprep.subr.mxu0 0.0
      %1126 = vmatpush1.msra.mxu0 0.0
      %1127 = vmatprep.subr.mxu0 0.0
      %1128 = vmatpush1.msra.mxu0 0.0
      %1129 = vmatprep.subr.mxu0 0.0
      %1130 = vmatpush1.msra.mxu0 0.0
      %1131 = vmatprep.subr.mxu0 0.0
      %1132 = vmatpush1.msra.mxu0 0.0
      %1133 = vmatprep.subr.mxu0 0.0
      %1134 = vmatpush1.msra.mxu0 0.0
      %1135 = vmatprep.subr.mxu0 0.0
      %1136 = vmatpush1.msra.mxu0 0.0
      %1137 = vmatprep.subr.mxu0 0.0
      %1138 = vmatpush1.msra.mxu0 0.0
      %1139 = vmatprep.subr.mxu0 0.0
      %1140 = vmatpush1.msra.mxu0 0.0
      %1141 = vmatprep.subr.mxu0 0.0
      %1142 = vmatpush1.msra.mxu0 0.0
      %1143 = vmatprep.subr.mxu0 0.0
      %1144 = vmatpush1.msra.mxu0 0.0
      %1145 = vmatprep.subr.mxu0 0.0
      %1146 = vmatpush1.msra.mxu0 0.0
      %1147 = vmatprep.subr.mxu0 0.0
      %1148 = vmatpush1.msra.mxu0 0.0
      %1149 = vmatprep.subr.mxu0 0.0
      %1150 = vmatpush1.msra.mxu0 0.0
      %1151 = vmatprep.subr.mxu0 0.0
      %1152 = vmatpush1.msra.mxu0 0.0
      %1153 = vmatprep.subr.mxu0 0.0
      %1154 = vmatpush1.msra.mxu0 0.0
      %1155 = vmatprep.subr.mxu0 0.0
      %1156 = vmatpush1.msra.mxu0 0.0
      %1157 = vmatprep.subr.mxu0 0.0
      %1158 = vmatpush1.msra.mxu0 0.0
      %1159 = vmatprep.subr.mxu0 0.0
      %1160 = vmatpush1.msra.mxu0 0.0
      %1161 = vmatprep.subr.mxu0 0.0
      %1162 = vmatpush1.msra.mxu0 0.0
      %1163 = vmatprep.subr.mxu0 0.0
      %1164 = vmatpush1.msra.mxu0 0.0
      %1165 = vmatprep.subr.mxu0 0.0
      %1166 = vmatpush1.msra.mxu0 0.0
      %1167 = vmatprep.subr.mxu0 0.0
      %1168 = vmatpush1.msra.mxu0 0.0
      %1169 = vmatprep.subr.mxu0 0.0
      %1170 = vmatpush1.msra.mxu0 0.0
      %1171 = vmatprep.subr.mxu0 0.0
      %1172 = vmatpush1.msra.mxu0 0.0
      %1173 = vmatprep.subr.mxu0 0.0
      %1174 = vmatpush1.msra.mxu0 0.0
      %1175 = vmatprep.subr.mxu0 0.0
      %1176 = vmatpush1.msra.mxu0 0.0
      %1177 = vmatprep.subr.mxu0 0.0
      %1178 = vmatpush1.msra.mxu0 0.0
      %1179 = vmatprep.subr.mxu0 0.0
      %1180 = vmatpush1.msra.mxu0 0.0
      %1181 = vmatprep.mubr.f32.mxu0 0.0
      %1182 = vmatmul.mubr.f32.gmra.mrb[0].mxu0 %v1070
      %v1183 = vpop.f32.mrb[0].mxu0
      %v1184 = vadd.f32 0.0, %v1183
      %v1185 = vpop.f32.mrb[0].mxu0
      %1186 = vmatprep.mubr.f32.mxu0 0.0
      %1187 = vmatmul.mubr.f32.gmra.mrb[0].mxu0 %v1073
      %v1188 = vpop.f32.mrb[0].mxu0
      %v1189 = vadd.f32 0.0, %v1188
      %v1190 = vpop.f32.mrb[0].mxu0
      %1191 = vmatprep.mubr.f32.mxu0 0.0
      %1192 = vmatmul.mubr.f32.gmra.mrb[0].mxu0 %v1076
      %v1193 = vpop.f32.mrb[0].mxu0
      %v1194 = vadd.f32 0.0, %v1193
      %v1195 = vpop.f32.mrb[0].mxu0
      %1196 = vmatprep.mubr.f32.mxu0 0.0
      %1197 = vmatmul.mubr.f32.gmra.mrb[0].mxu0 %v1079
      %v1198 = vpop.f32.mrb[0].mxu0
      %v1199 = vadd.f32 0.0, %v1198
      %v1200 = vpop.f32.mrb[0].mxu0
      %1201 = vmatprep.mubr.f32.mxu0 0.0
      %1202 = vmatmul.mubr.f32.gmra.mrb[0].mxu0 %v1082
      %v1203 = vpop.f32.mrb[0].mxu0
      %v1204 = vadd.f32 0.0, %v1203
      %v1205 = vpop.f32.mrb[0].mxu0
      %1206 = vmatprep.mubr.f32.mxu0 0.0
      %1207 = vmatmul.mubr.f32.gmra.mrb[0].mxu0 %v1085
      %v1208 = vpop.f32.mrb[0].mxu0
      %v1209 = vadd.f32 0.0, %v1208
      %v1210 = vpop.f32.mrb[0].mxu0
      %1211 = vmatprep.mubr.f32.mxu0 0.0
      %1212 = vmatmul.mubr.f32.gmra.mrb[0].mxu0 %v1088
      %v1213 = vpop.f32.mrb[0].mxu0
      %v1214 = vadd.f32 0.0, %v1213
      %v1215 = vpop.f32.mrb[0].mxu0
      %1216 = vmatprep.mubr.f32.mxu0 0.0
      %1217 = vmatmul.mubr.f32.gmra.mrb[0].mxu0 %v1091
      %v1218 = vpop.f32.mrb[0].mxu0
      %v1219 = vadd.f32 0.0, %v1218
      %v1220 = vpop.f32.mrb[0].mxu0
      %1221 = vmatprep.mubr.f32.mxu0 0.0
      %1222 = vmatmul.mubr.f32.gmra.mrb[0].mxu0 %v1094
      %v1223 = vpop.f32.mrb[0].mxu0
      %v1224 = vadd.f32 0.0, %v1223
      %v1225 = vpop.f32.mrb[0].mxu0
      %1226 = vmatprep.mubr.f32.mxu0 0.0
      %1227 = vmatmul.mubr.f32.gmra.mrb[0].mxu0 %v1097
      %v1228 = vpop.f32.mrb[0].mxu0
      %v1229 = vadd.f32 0.0, %v1228
      %v1230 = vpop.f32.mrb[0].mxu0
      %1231 = vmatprep.mubr.f32.mxu0 0.0
      %1232 = vmatmul.mubr.f32.gmra.mrb[0].mxu0 %v1100
      %v1233 = vpop.f32.mrb[0].mxu0
      %v1234 = vadd.f32 0.0, %v1233
      %v1235 = vpop.f32.mrb[0].mxu0
      %1236 = vmatprep.mubr.f32.mxu0 0.0
      %1237 = vmatmul.mubr.f32.gmra.mrb[0].mxu0 %v1103
      %v1238 = vpop.f32.mrb[0].mxu0
      %v1239 = vadd.f32 0.0, %v1238
      %v1240 = vpop.f32.mrb[0].mxu0
      %1241 = vmatprep.mubr.f32.mxu0 0.0
      %1242 = vmatmul.mubr.f32.gmra.mrb[0].mxu0 %v1106
      %v1243 = vpop.f32.mrb[0].mxu0
      %v1244 = vadd.f32 0.0, %v1243
      %v1245 = vpop.f32.mrb[0].mxu0
      %1246 = vmatprep.mubr.f32.mxu0 0.0
      %1247 = vmatmul.mubr.f32.gmra.mrb[0].mxu0 %v1109
      %v1248 = vpop.f32.mrb[0].mxu0
      %v1249 = vadd.f32 0.0, %v1248
      %v1250 = vpop.f32.mrb[0].mxu0
      %1251 = vmatprep.mubr.f32.mxu0 0.0
      %1252 = vmatmul.mubr.f32.gmra.mrb[0].mxu0 %v1112
      %v1253 = vpop.f32.mrb[0].mxu0
      %v1254 = vadd.f32 0.0, %v1253
      %v1255 = vpop.f32.mrb[0].mxu0
      %1256 = vmatprep.mubr.f32.mxu0 0.0
      %1257 = vmatmul.mubr.f32.gmra.mrb[0].mxu0 %v1115
      %v1258 = vpop.f32.mrb[0].mxu0
      %v1259 = vadd.f32 0.0, %v1258
      %v1260 = vpop.f32.mrb[0].mxu0
      %1261 = vdwg.mxu0
      %vm1262 = vcmask 31744
      %v1264 = vsel %vm1262, %v1036, 0
      %v1267 = vsel %vm1262, %v1037, 0
      %v1270 = vsel %vm1262, %v1038, 0
      %v1273 = vsel %vm1262, %v1039, 0
      %v1276 = vsel %vm1262, %v1040, 0
      %v1279 = vsel %vm1262, %v1041, 0
      %v1282 = vsel %vm1262, %v1042, 0
      %v1285 = vsel %vm1262, %v1043, 0
      %v1288 = vsel %vm1262, %v1044, 0
      %v1291 = vsel %vm1262, %v1045, 0
      %v1294 = vsel %vm1262, %v1046, 0
      %v1297 = vsel %vm1262, %v1047, 0
      %v1300 = vsel %vm1262, %v1048, 0
      %v1303 = vsel %vm1262, %v1049, 0
      %v1306 = vsel %vm1262, %v1050, 0
      %v1309 = vsel %vm1262, %v1051, 0
      %vm1311 = vcmask 1043456
      %v1313 = vsel %vm1311, %v1052, 0
      %1315 = vmatprep.subr.mxu0 0.0
      %1316 = vmatpush1.msra.mxu0 %v1313
      %1317 = vmatprep.subr.mxu0 0.0
      %1318 = vmatpush1.msra.mxu0 0.0
      %1319 = vmatprep.subr.mxu0 0.0
      %1320 = vmatpush1.msra.mxu0 0.0
      %1321 = vmatprep.subr.mxu0 0.0
      %1322 = vmatpush1.msra.mxu0 0.0
      %1323 = vmatprep.subr.mxu0 0.0
      %1324 = vmatpush1.msra.mxu0 0.0
      %1325 = vmatprep.subr.mxu0 0.0
      %1326 = vmatpush1.msra.mxu0 0.0
      %1327 = vmatprep.subr.mxu0 0.0
      %1328 = vmatpush1.msra.mxu0 0.0
      %1329 = vmatprep.subr.mxu0 0.0
      %1330 = vmatpush1.msra.mxu0 0.0
      %1331 = vmatprep.subr.mxu0 0.0
      %1332 = vmatpush1.msra.mxu0 0.0
      %1333 = vmatprep.subr.mxu0 0.0
      %1334 = vmatpush1.msra.mxu0 0.0
      %1335 = vmatprep.subr.mxu0 0.0
      %1336 = vmatpush1.msra.mxu0 0.0
      %1337 = vmatprep.subr.mxu0 0.0
      %1338 = vmatpush1.msra.mxu0 0.0
      %1339 = vmatprep.subr.mxu0 0.0
      %1340 = vmatpush1.msra.mxu0 0.0
      %1341 = vmatprep.subr.mxu0 0.0
      %1342 = vmatpush1.msra.mxu0 0.0
      %1343 = vmatprep.subr.mxu0 0.0
      %1344 = vmatpush1.msra.mxu0 0.0
      %1345 = vmatprep.subr.mxu0 0.0
      %1346 = vmatpush1.msra.mxu0 0.0
      %1347 = vmatprep.subr.mxu0 0.0
      %1348 = vmatpush1.msra.mxu0 0.0
      %1349 = vmatprep.subr.mxu0 0.0
      %1350 = vmatpush1.msra.mxu0 0.0
      %1351 = vmatprep.subr.mxu0 0.0
      %1352 = vmatpush1.msra.mxu0 0.0
      %1353 = vmatprep.subr.mxu0 0.0
      %1354 = vmatpush1.msra.mxu0 0.0
      %1355 = vmatprep.subr.mxu0 0.0
      %1356 = vmatpush1.msra.mxu0 0.0
      %1357 = vmatprep.subr.mxu0 0.0
      %1358 = vmatpush1.msra.mxu0 0.0
      %1359 = vmatprep.subr.mxu0 0.0
      %1360 = vmatpush1.msra.mxu0 0.0
      %1361 = vmatprep.subr.mxu0 0.0
      %1362 = vmatpush1.msra.mxu0 0.0
      %1363 = vmatprep.subr.mxu0 0.0
      %1364 = vmatpush1.msra.mxu0 0.0
      %1365 = vmatprep.subr.mxu0 0.0
      %1366 = vmatpush1.msra.mxu0 0.0
      %1367 = vmatprep.subr.mxu0 0.0
      %1368 = vmatpush1.msra.mxu0 0.0
      %1369 = vmatprep.subr.mxu0 0.0
      %1370 = vmatpush1.msra.mxu0 0.0
      %1371 = vmatprep.subr.mxu0 0.0
      %1372 = vmatpush1.msra.mxu0 0.0
      %1373 = vmatprep.subr.mxu0 0.0
      %1374 = vmatpush1.msra.mxu0 0.0
      %1375 = vmatprep.subr.mxu0 0.0
      %1376 = vmatpush1.msra.mxu0 0.0
      %1377 = vmatprep.subr.mxu0 0.0
      %1378 = vmatpush1.msra.mxu0 0.0
      %1379 = vmatprep.mubr.f32.mxu0 0.0
      %1380 = vmatmul.mubr.f32.gmra.mrb[0].mxu0 %v1264
      %v1381 = vpop.f32.mrb[0].mxu0
      %v1382 = vadd.f32 %v1184, %v1381
      %v1383 = vpop.f32.mrb[0].mxu0
      %1384 = vmatprep.mubr.f32.mxu0 0.0
      %1385 = vmatmul.mubr.f32.gmra.mrb[0].mxu0 %v1267
      %v1386 = vpop.f32.mrb[0].mxu0
      %v1387 = vadd.f32 %v1189, %v1386
      %v1388 = vpop.f32.mrb[0].mxu0
      %1389 = vmatprep.mubr.f32.mxu0 0.0
      %1390 = vmatmul.mubr.f32.gmra.mrb[0].mxu0 %v1270
      %v1391 = vpop.f32.mrb[0].mxu0
      %v1392 = vadd.f32 %v1194, %v1391
      %v1393 = vpop.f32.mrb[0].mxu0
      %1394 = vmatprep.mubr.f32.mxu0 0.0
      %1395 = vmatmul.mubr.f32.gmra.mrb[0].mxu0 %v1273
      %v1396 = vpop.f32.mrb[0].mxu0
      %v1397 = vadd.f32 %v1199, %v1396
      %v1398 = vpop.f32.mrb[0].mxu0
      %1399 = vmatprep.mubr.f32.mxu0 0.0
      %1400 = vmatmul.mubr.f32.gmra.mrb[0].mxu0 %v1276
      %v1401 = vpop.f32.mrb[0].mxu0
      %v1402 = vadd.f32 %v1204, %v1401
      %v1403 = vpop.f32.mrb[0].mxu0
      %1404 = vmatprep.mubr.f32.mxu0 0.0
      %1405 = vmatmul.mubr.f32.gmra.mrb[0].mxu0 %v1279
      %v1406 = vpop.f32.mrb[0].mxu0
      %v1407 = vadd.f32 %v1209, %v1406
      %v1408 = vpop.f32.mrb[0].mxu0
      %1409 = vmatprep.mubr.f32.mxu0 0.0
      %1410 = vmatmul.mubr.f32.gmra.mrb[0].mxu0 %v1282
      %v1411 = vpop.f32.mrb[0].mxu0
      %v1412 = vadd.f32 %v1214, %v1411
      %v1413 = vpop.f32.mrb[0].mxu0
      %1414 = vmatprep.mubr.f32.mxu0 0.0
      %1415 = vmatmul.mubr.f32.gmra.mrb[0].mxu0 %v1285
      %v1416 = vpop.f32.mrb[0].mxu0
      %v1417 = vadd.f32 %v1219, %v1416
      %v1418 = vpop.f32.mrb[0].mxu0
      %1419 = vmatprep.mubr.f32.mxu0 0.0
      %1420 = vmatmul.mubr.f32.gmra.mrb[0].mxu0 %v1288
      %v1421 = vpop.f32.mrb[0].mxu0
      %v1422 = vadd.f32 %v1224, %v1421
      %v1423 = vpop.f32.mrb[0].mxu0
      %1424 = vmatprep.mubr.f32.mxu0 0.0
      %1425 = vmatmul.mubr.f32.gmra.mrb[0].mxu0 %v1291
      %v1426 = vpop.f32.mrb[0].mxu0
      %v1427 = vadd.f32 %v1229, %v1426
      %v1428 = vpop.f32.mrb[0].mxu0
      %1429 = vmatprep.mubr.f32.mxu0 0.0
      %1430 = vmatmul.mubr.f32.gmra.mrb[0].mxu0 %v1294
      %v1431 = vpop.f32.mrb[0].mxu0
      %v1432 = vadd.f32 %v1234, %v1431
      %v1433 = vpop.f32.mrb[0].mxu0
      %1434 = vmatprep.mubr.f32.mxu0 0.0
      %1435 = vmatmul.mubr.f32.gmra.mrb[0].mxu0 %v1297
      %v1436 = vpop.f32.mrb[0].mxu0
      %v1437 = vadd.f32 %v1239, %v1436
      %v1438 = vpop.f32.mrb[0].mxu0
      %1439 = vmatprep.mubr.f32.mxu0 0.0
      %1440 = vmatmul.mubr.f32.gmra.mrb[0].mxu0 %v1300
      %v1441 = vpop.f32.mrb[0].mxu0
      %v1442 = vadd.f32 %v1244, %v1441
      %v1443 = vpop.f32.mrb[0].mxu0
      %1444 = vmatprep.mubr.f32.mxu0 0.0
      %1445 = vmatmul.mubr.f32.gmra.mrb[0].mxu0 %v1303
      %v1446 = vpop.f32.mrb[0].mxu0
      %v1447 = vadd.f32 %v1249, %v1446
      %v1448 = vpop.f32.mrb[0].mxu0
      %1449 = vmatprep.mubr.f32.mxu0 0.0
      %1450 = vmatmul.mubr.f32.gmra.mrb[0].mxu0 %v1306
      %v1451 = vpop.f32.mrb[0].mxu0
      %v1452 = vadd.f32 %v1254, %v1451
      %v1453 = vpop.f32.mrb[0].mxu0
      %1454 = vmatprep.mubr.f32.mxu0 0.0
      %1455 = vmatmul.mubr.f32.gmra.mrb[0].mxu0 %v1309
      %v1456 = vpop.f32.mrb[0].mxu0
      %v1457 = vadd.f32 %v1259, %v1456
      %v1458 = vpop.f32.mrb[0].mxu0
      %1459 = vdwg.mxu0
      %1460 = vst.msk [vmem:[%s418] sm:$0xff] %vm962, %v1382
      %1461 = vst.msk [vmem:[%s418 + $0x8] sm:$0xff] %vm962, %v1387
      %1462 = vst.msk [vmem:[%s418 + $0x10] sm:$0xff] %vm962, %v1392
      %1463 = vst.msk [vmem:[%s418 + $0x18] sm:$0xff] %vm962, %v1397
      %1464 = vst.msk [vmem:[%s418 + $0x20] sm:$0xff] %vm962, %v1402
      %1465 = vst.msk [vmem:[%s418 + $0x28] sm:$0xff] %vm962, %v1407
      %1466 = vst.msk [vmem:[%s418 + $0x30] sm:$0xff] %vm962, %v1412
      %1467 = vst.msk [vmem:[%s418 + $0x38] sm:$0xff] %vm962, %v1417
      %1468 = vst.msk [vmem:[%s418 + $0x40] sm:$0xff] %vm962, %v1422
      %1469 = vst.msk [vmem:[%s418 + $0x48] sm:$0xff] %vm962, %v1427
      %1470 = vst.msk [vmem:[%s418 + $0x50] sm:$0xff] %vm962, %v1432
      %1471 = vst.msk [vmem:[%s418 + $0x58] sm:$0xff] %vm962, %v1437
      %1472 = vst.msk [vmem:[%s418 + $0x60] sm:$0xff] %vm962, %v1442
      %1473 = vst.msk [vmem:[%s418 + $0x68] sm:$0xff] %vm962, %v1447
      %1474 = vst.msk [vmem:[%s418 + $0x70] sm:$0xff] %vm962, %v1452
      %1475 = vst.msk [vmem:[%s418 + $0x78] sm:$0xff] %vm962, %v1457
      %p1476 = scmp.lt.s32.totalorder %s25, 1
      %s1477 = scalar_select %p1476, %s25, 1
      %p1478 = scmp.lt.s32.totalorder %s26, 0
      %s1479 = scalar_select %p1478, %s26, 0
      %s1480 = smul.addr %s1477, 16
      %s1481 = sadd.s32 %s1479, %s1480
      %s1482 = smul.addr %s1481, 8
      %s1483 = scalar_lea.vmem %s10, %s1482
      // Predicated region
      $region61: #{tpu_custom_call.1} parent=59 // pred_check
        %p1484 = pneg %p277
      $region62: #{tpu_custom_call.1} parent=59 // pred_check_branch
        %1486 = sbr.rel (%p1484) target = $region64
      $region63: #{tpu_custom_call.1} parent=59 // pred_region
        _
      $region64: #{tpu_custom_call.1} parent=59 // pred_fallthru
        _
    $region60: #{tpu_custom_call.1} parent=5 // pred_fallthru
      _
    %p1487 = scmp.le.s32.totalorder 2, %s16
    // Predicated region
    $region65: #{tpu_custom_call.1} parent=5 // pred_check
      %p1488 = pneg %p1487
    $region66: #{tpu_custom_call.1} parent=5 // pred_check_branch
      %1490 = sbr.rel (%p1488) target = $region68
    $region67: #{tpu_custom_call.1} parent=5 // pred_region
      %s1491 = ssub.s32 %s16, 2
      // Predicated region
      $region69: #{tpu_custom_call.1} parent=67 // pred_check
        %p1492 = pneg %p283
      $region70: #{tpu_custom_call.1} parent=67 // pred_check_branch
        %1494 = sbr.rel (%p1492) target = $region72
      $region71: #{tpu_custom_call.1} parent=67 // pred_region
        %p1495 = scmp.lt.s32.totalorder %s27, 1
        %s1496 = scalar_select %p1495, %s27, 1
        %p1497 = scmp.lt.s32.totalorder %s28, 0
        %s1498 = scalar_select %p1497, %s28, 0
        %s1499 = smul.addr %s1496, 16
        %s1500 = sadd.s32 %s1498, %s1499
        %s1501 = smul.addr %s1500, 8
        %s1502 = scalar_lea.vmem %s10, %s1501
      $region72: #{tpu_custom_call.1} parent=67 // pred_fallthru
        _
    $region68: #{tpu_custom_call.1} parent=5 // pred_fallthru
      _
  $region6: #{tpu_custom_call.1} parent=0 // loop_footer
    %s20 = sadd.s32 1, %s16
  $region7: #{tpu_custom_call.1} parent=0 // loop_footer_branch
    %15 = sbr.rel target = $region3
  $region8: #{tpu_custom_call.1} parent=0 // loop_exit
    _

</llo_original>
